<compile_context>
chip_gen: v7x
topology: tpu7x:2x2x1
jax: 0.10.0
libtpu: 0.0.40
codegen_flags: <defaults>
</compile_context>

<pallas_src>
import functools

import jax
import jax.numpy as jnp
from jax.experimental import pallas as pl
from jax.experimental.pallas import tpu as pltpu

N_BINS = 15  # must be <= 128 (bins live on the lane axis)


def _round_up(x, m):
    return ((x + m - 1) // m) * m


def _ece_stats_kernel(logits_ref, labels_ref, stats_ref, *,
                      n_bins, n_valid, tiles_per_core, tile_rows):
    core = pl.program_id(0)   # "parallel" axis (batch half / TensorCore)
    step = pl.program_id(1)   # "arbitrary" axis (tiles within the half)

    # Zero this core's accumulator block on its first tile.
    @pl.when(step == 0)
    def _():
        stats_ref[...] = jnp.zeros_like(stats_ref)

    logits = logits_ref[...].astype(jnp.float32)   # (tn, C)
    labels = labels_ref[...]                       # (tn, 1) int32
    tn, num_classes = logits.shape

    # Softmax confidence without materializing probs:
    #   conf = max(softmax(x)) = exp(0) / sum(exp(x - max)) = 1 / denom
    m = jnp.max(logits, axis=1, keepdims=True)                      # (tn, 1)
    denom = jnp.sum(jnp.exp(logits - m), axis=1, keepdims=True)     # (tn, 1)
    conf = 1.0 / denom  # exact divide -> matches max(e / denom) bit-for-bit

    # First-argmax prediction (torch.max tie-breaking: smallest index).
    col = jax.lax.broadcasted_iota(jnp.int32, (tn, num_classes), 1)
    pred = jnp.min(jnp.where(logits == m, col, num_classes),
                   axis=1, keepdims=True)                           # (tn, 1)
    acc = (pred == labels).astype(jnp.float32)                      # (tn, 1)

    # Single-compare bin assignment: conf in (b/n, (b+1)/n]  <=>  ceil(conf*n)-1 == b
    bin_i = jnp.ceil(conf * n_bins).astype(jnp.int32) - 1
    bin_i = jnp.clip(bin_i, 0, n_bins - 1)                          # (tn, 1)

    # Padded rows (beyond the real batch) are sent to bin -1 -> all-zero one-hot row.
    row = jax.lax.broadcasted_iota(jnp.int32, (tn, 1), 0)
    g_row = (core * tiles_per_core + step) * tile_rows + row
    bin_i = jnp.where(g_row < n_valid, bin_i, -1)                   # (tn, 1)

    lane = jax.lax.broadcasted_iota(jnp.int32, (tn, 128), 1)
    one_hot = (lane == bin_i).astype(jnp.float32)                   # (tn, 128)

    # Payload lanes: 0 -> 1 (counts), 1 -> confidence, 2 -> accuracy, rest 0.
    payload = jnp.where(lane == 0, 1.0,
              jnp.where(lane == 1, conf,
              jnp.where(lane == 2, acc, 0.0)))                      # (tn, 128)

    # Per-bin partial sums on the MXU:
    #   update[s, b] = sum_n payload[n, s] * one_hot[n, b]
    update = jax.lax.dot_general(
        payload, one_hot,
        dimension_numbers=(((0,), (0,)), ((), ())),   # contract over samples
        preferred_element_type=jnp.float32,
        precision=jax.lax.Precision.HIGHEST)          # keep full f32 accuracy

    # Single full-block read-modify-write of the (8, 128) accumulator.
    stats_ref[...] += update[0:8, :]


def ece_loss_pallas(logits, labels, n_bins=N_BINS, tile_rows=1024):
    """Pallas implementation of ECELossTorch.forward. Returns shape (1,)."""
    n, c = logits.shape
    assert n_bins <= 128

    num_cores = 2  # split batch for v7x's 2 TensorCores; harmless on 1-TC chips
    half = -(-n // num_cores)                          # ceil(n / 2)
    tile = max(128, min(tile_rows, _round_up(half, 128)))
    tiles_per_core = -(-half // tile)
    n_pad = num_cores * tiles_per_core * tile

    logits_p = jnp.pad(logits.astype(jnp.float32), ((0, n_pad - n), (0, 0)))
    labels_p = jnp.pad(labels.astype(jnp.int32), (0, n_pad - n)).reshape(n_pad, 1)

    kernel = functools.partial(
        _ece_stats_kernel, n_bins=n_bins, n_valid=n,
        tiles_per_core=tiles_per_core, tile_rows=tile)

    stats = pl.pallas_call(
        kernel,
        out_shape=jax.ShapeDtypeStruct((num_cores, 8, 128), jnp.float32),
        grid_spec=pltpu.PrefetchScalarGridSpec(
            num_scalar_prefetch=0,
            grid=(num_cores, tiles_per_core),
            in_specs=[
                pl.BlockSpec((tile, c),
                             lambda co, i: (co * tiles_per_core + i, 0)),
                # labels as (tile, 1): lane-padded in VMEM (~tile*512 B/buf) —
                # accepted cost at tile <= 1024 (see module docstring).
                pl.BlockSpec((tile, 1),
                             lambda co, i: (co * tiles_per_core + i, 0)),
            ],
            out_specs=pl.BlockSpec((None, 8, 128), lambda co, i: (co, 0, 0)),
        ),
        compiler_params=pltpu.CompilerParams(
            dimension_semantics=("parallel", "arbitrary"),
            vmem_limit_bytes=32 * 1024 * 1024,
        ),
    )(logits_p, labels_p)

    # Tiny finalization over num_cores x 3 x n_bins numbers in plain JAX
    # (mirrors the `if prop_in_bin > 0` branch of the PyTorch loop).
    s = jnp.sum(stats, axis=0)            # (8, 128)
    cnt = s[0, :n_bins]
    csum = s[1, :n_bins]
    asum = s[2, :n_bins]
    prop = cnt / float(n)
    safe = jnp.where(cnt > 0, cnt, 1.0)
    term = jnp.where(cnt > 0, jnp.abs(csum / safe - asum / safe) * prop, 0.0)
    return jnp.sum(term).reshape(1)


def ece_loss_ref(logits, labels, n_bins=N_BINS):
    """Pure-JAX reference (mirrors the PyTorch loop)."""
    probs = jax.nn.softmax(logits.astype(jnp.float32), axis=1)
    conf = jnp.max(probs, axis=1)
    pred = jnp.argmax(probs, axis=1)
    acc = (pred == labels).astype(jnp.float32)
    bounds = jnp.linspace(0.0, 1.0, n_bins + 1)
    ece = jnp.zeros((), jnp.float32)
    for b in range(n_bins):
        in_bin = (conf > bounds[b]) & (conf <= bounds[b + 1])
        cnt = jnp.sum(in_bin.astype(jnp.float32))
        prop = cnt / conf.shape[0]
        safe = jnp.maximum(cnt, 1.0)
        acc_in = jnp.sum(jnp.where(in_bin, acc, 0.0)) / safe
        conf_in = jnp.sum(jnp.where(in_bin, conf, 0.0)) / safe
        ece = ece + jnp.where(cnt > 0, jnp.abs(conf_in - acc_in) * prop, 0.0)
    return ece.reshape(1)


if __name__ == "__main__":
    key = jax.random.PRNGKey(0)
    k_logits, k_labels = jax.random.split(key)

    N, C = 128, 10  # small classification problem: 128 samples, 10 classes
    logits = 2.0 * jax.random.normal(k_logits, (N, C), dtype=jnp.float32)
    labels = jax.random.randint(k_labels, (N,), 0, C, dtype=jnp.int32)

    ece_kernel = ece_loss_pallas(logits, labels)
    jax.block_until_ready(ece_kernel)

    ece_reference = ece_loss_ref(logits, labels)
    jax.block_until_ready(ece_reference)

    assert ece_kernel.shape == (1,)
    assert jnp.allclose(ece_kernel, ece_reference, rtol=1e-5, atol=1e-6), (
        ece_kernel, ece_reference)

    print("KERNEL_OK")
</pallas_src>

<mosaic_0001>
module attributes {stable_mosaic.version = 11 : i64} {
  func.func @_ece_stats_kernel(%arg0: i32, %arg1: i32, %arg2: memref<128x10xf32, #tpu.memory_space<vmem>>, %arg3: memref<128x1xi32, #tpu.memory_space<vmem>>, %arg4: memref<1x8x128xf32, #tpu.memory_space<vmem>>) attributes {dimension_semantics = [#tpu.dimension_semantics<parallel>, #tpu.dimension_semantics<arbitrary>], iteration_bounds = array<i64: 2, 1>, scalar_prefetch = 0 : i64, scratch_operands = 0 : i64, tpu.core_type = #tpu.core_type<tc>, window_params = [{transform_indices = @transform_0, window_bounds = array<i64: 128, 10>}, {transform_indices = @transform_1, window_bounds = array<i64: 128, 1>}, {transform_indices = @transform_2, window_bounds = array<i64: 1, 8, 128>}]} {
    %c0_i32 = arith.constant 0 : i32
    %0 = arith.cmpi eq, %arg1, %c0_i32 : i32
    %1 = arith.extui %0 : i1 to i32
    %c0_i32_0 = arith.constant 0 : i32
    %2 = arith.cmpi ne, %1, %c0_i32_0 : i32
    scf.if %2 {
      %cst_22 = arith.constant 0.000000e+00 : f32
      %72 = vector.broadcast %cst_22 : f32 to vector<8x128xf32>
      %c0_23 = arith.constant 0 : index
      %c0_24 = arith.constant 0 : index
      %c0_25 = arith.constant 0 : index
      %73 = vector.load %arg4[%c0_23, %c0_24, %c0_25] : memref<1x8x128xf32, #tpu.memory_space<vmem>>, vector<1x8x128xf32>
      %74 = vector.shape_cast %73 : vector<1x8x128xf32> to vector<8x128xf32>
      %75 = vector.shape_cast %72 : vector<8x128xf32> to vector<1x8x128xf32>
      tpu.vector_store %arg4[%c0_23, %c0_24, %c0_25], %75 {strides = array<i32>} : memref<1x8x128xf32, #tpu.memory_space<vmem>>, vector<1x8x128xf32>,
    } else {
    }
    %c0 = arith.constant 0 : index
    %c0_1 = arith.constant 0 : index
    %3 = vector.load %arg2[%c0, %c0_1] : memref<128x10xf32, #tpu.memory_space<vmem>>, vector<128x10xf32>
    %c0_2 = arith.constant 0 : index
    %c0_3 = arith.constant 0 : index
    %4 = vector.load %arg3[%c0_2, %c0_3] : memref<128x1xi32, #tpu.memory_space<vmem>>, vector<128x1xi32>
    %cst = arith.constant dense<0xFF800000> : vector<128xf32>
    %5 = vector.multi_reduction <maximumf>, %3, %cst [1] : vector<128x10xf32> to vector<128xf32>
    %6 = vector.shape_cast %5 : vector<128xf32> to vector<128x1xf32>
    %7 = vector.broadcast %6 : vector<128x1xf32> to vector<128x10xf32>
    %8 = arith.subf %3, %7 : vector<128x10xf32>
    %9 = math.exp %8 : vector<128x10xf32>
    %cst_4 = arith.constant dense<0.000000e+00> : vector<128xf32>
    %10 = vector.multi_reduction <add>, %9, %cst_4 [1] : vector<128x10xf32> to vector<128xf32>
    %11 = vector.shape_cast %10 : vector<128xf32> to vector<128x1xf32>
    %cst_5 = arith.constant 1.000000e+00 : f32
    %12 = vector.broadcast %cst_5 : f32 to vector<128x1xf32>
    %13 = arith.divf %12, %11 : vector<128x1xf32>
    %14 = tpu.iota {dimensions = array<i32: 1>} : vector<128x10xi32>
    %15 = vector.broadcast %6 : vector<128x1xf32> to vector<128x10xf32>
    %16 = arith.cmpf oeq, %3, %15 : vector<128x10xf32>
    %c10_i32 = arith.constant 10 : i32
    %17 = vector.broadcast %c10_i32 : i32 to vector<128x10xi32>
    %18 = arith.select %16, %14, %17 : vector<128x10xi1>, vector<128x10xi32>
    %cst_6 = arith.constant dense<2147483647> : vector<128xi32>
    %19 = vector.multi_reduction <minsi>, %18, %cst_6 [1] : vector<128x10xi32> to vector<128xi32>
    %20 = vector.shape_cast %19 : vector<128xi32> to vector<128x1xi32>
    %21 = arith.cmpi eq, %20, %4 : vector<128x1xi32>
    %22 = arith.extui %21 : vector<128x1xi1> to vector<128x1xi32>
    %23 = arith.sitofp %22 : vector<128x1xi32> to vector<128x1xf32>
    %cst_7 = arith.constant 1.500000e+01 : f32
    %24 = vector.broadcast %cst_7 : f32 to vector<128x1xf32>
    %25 = arith.mulf %13, %24 : vector<128x1xf32>
    %26 = math.ceil %25 : vector<128x1xf32>
    %27 = arith.fptosi %26 : vector<128x1xf32> to vector<128x1xi32>
    %c1_i32 = arith.constant 1 : i32
    %28 = vector.broadcast %c1_i32 : i32 to vector<128x1xi32>
    %29 = arith.subi %27, %28 : vector<128x1xi32>
    %c0_i32_8 = arith.constant 0 : i32
    %c14_i32 = arith.constant 14 : i32
    %30 = vector.broadcast %c0_i32_8 : i32 to vector<128x1xi32>
    %31 = arith.maxsi %30, %29 : vector<128x1xi32>
    %32 = vector.broadcast %c14_i32 : i32 to vector<128x1xi32>
    %33 = arith.minsi %32, %31 : vector<128x1xi32>
    %34 = tpu.iota {dimensions = array<i32: 0>} : vector<128x1xi32>
    %c1_i32_9 = arith.constant 1 : i32
    %35 = arith.muli %arg0, %c1_i32_9 : i32
    %36 = arith.addi %35, %arg1 : i32
    %c128_i32 = arith.constant 128 : i32
    %37 = arith.muli %36, %c128_i32 : i32
    %38 = vector.broadcast %37 : i32 to vector<128x1xi32>
    %39 = arith.addi %38, %34 : vector<128x1xi32>
    %c128_i32_10 = arith.constant 128 : i32
    %40 = vector.broadcast %c128_i32_10 : i32 to vector<128x1xi32>
    %41 = arith.cmpi slt, %39, %40 : vector<128x1xi32>
    %c-1_i32 = arith.constant -1 : i32
    %42 = vector.broadcast %c-1_i32 : i32 to vector<128x1xi32>
    %43 = arith.select %41, %33, %42 : vector<128x1xi1>, vector<128x1xi32>
    %44 = tpu.iota {dimensions = array<i32: 1>} : vector<128x128xi32>
    %45 = vector.broadcast %43 : vector<128x1xi32> to vector<128x128xi32>
    %46 = arith.cmpi eq, %44, %45 : vector<128x128xi32>
    %47 = arith.extui %46 : vector<128x128xi1> to vector<128x128xi32>
    %48 = arith.sitofp %47 : vector<128x128xi32> to vector<128x128xf32>
    %c0_i32_11 = arith.constant 0 : i32
    %49 = vector.broadcast %c0_i32_11 : i32 to vector<128x128xi32>
    %50 = arith.cmpi eq, %44, %49 : vector<128x128xi32>
    %c1_i32_12 = arith.constant 1 : i32
    %51 = vector.broadcast %c1_i32_12 : i32 to vector<128x128xi32>
    %52 = arith.cmpi eq, %44, %51 : vector<128x128xi32>
    %c2_i32 = arith.constant 2 : i32
    %53 = vector.broadcast %c2_i32 : i32 to vector<128x128xi32>
    %54 = arith.cmpi eq, %44, %53 : vector<128x128xi32>
    %cst_13 = arith.constant 0.000000e+00 : f32
    %55 = vector.shape_cast %23 : vector<128x1xf32> to vector<128x1xf32>
    %56 = vector.broadcast %55 : vector<128x1xf32> to vector<128x128xf32>
    %57 = vector.broadcast %cst_13 : f32 to vector<128x128xf32>
    %58 = arith.select %54, %56, %57 : vector<128x128xi1>, vector<128x128xf32>
    %59 = vector.shape_cast %13 : vector<128x1xf32> to vector<128x1xf32>
    %60 = vector.broadcast %59 : vector<128x1xf32> to vector<128x128xf32>
    %61 = arith.select %52, %60, %58 : vector<128x128xi1>, vector<128x128xf32>
    %cst_14 = arith.constant 1.000000e+00 : f32
    %62 = vector.broadcast %cst_14 : f32 to vector<128x128xf32>
    %63 = arith.select %50, %62, %61 : vector<128x128xi1>, vector<128x128xf32>
    %cst_15 = arith.constant dense<0.000000e+00> : vector<128x128xf32>
    %64 = tpu.matmul %63, %48, %cst_15 {dimension_numbers = #tpu.dot_dimension_numbers<[0], [0], [1], [1], [0, 1, 1, 1], [], []>, precision = #tpu.contract_precision<fp32>} : vector<128x128xf32>, vector<128x128xf32>, vector<128x128xf32> -> vector<128x128xf32>
    %c0_16 = arith.constant 0 : index
    %c0_17 = arith.constant 0 : index
    %c0_18 = arith.constant 0 : index
    %65 = vector.load %arg4[%c0_16, %c0_17, %c0_18] : memref<1x8x128xf32, #tpu.memory_space<vmem>>, vector<1x8x128xf32>
    %66 = vector.shape_cast %65 : vector<1x8x128xf32> to vector<8x128xf32>
    %67 = vector.extract_strided_slice %64 {offsets = [0, 0], sizes = [8, 128], strides = [1, 1]} : vector<128x128xf32> to vector<8x128xf32>
    %68 = arith.addf %66, %67 : vector<8x128xf32>
    %c0_19 = arith.constant 0 : index
    %c0_20 = arith.constant 0 : index
    %c0_21 = arith.constant 0 : index
    %69 = vector.load %arg4[%c0_19, %c0_20, %c0_21] : memref<1x8x128xf32, #tpu.memory_space<vmem>>, vector<1x8x128xf32>
    %70 = vector.shape_cast %69 : vector<1x8x128xf32> to vector<8x128xf32>
    %71 = vector.shape_cast %68 : vector<8x128xf32> to vector<1x8x128xf32>
    tpu.vector_store %arg4[%c0_19, %c0_20, %c0_21], %71 {strides = array<i32>} : memref<1x8x128xf32, #tpu.memory_space<vmem>>, vector<1x8x128xf32>,
    return
  }
  func.func @transform_0(%arg0: i32, %arg1: i32) -> (i32, i32) {
    %c1_i32 = arith.constant 1 : i32
    %0 = arith.muli %arg0, %c1_i32 : i32
    %1 = arith.addi %0, %arg1 : i32
    %c0_i32 = arith.constant 0 : i32
    %c0_i32_0 = arith.constant 0 : i32
    return %1, %c0_i32 : i32, i32
  }
  func.func @transform_1(%arg0: i32, %arg1: i32) -> (i32, i32) {
    %c1_i32 = arith.constant 1 : i32
    %0 = arith.muli %arg0, %c1_i32 : i32
    %1 = arith.addi %0, %arg1 : i32
    %c0_i32 = arith.constant 0 : i32
    %c0_i32_0 = arith.constant 0 : i32
    return %1, %c0_i32 : i32, i32
  }
  func.func @transform_2(%arg0: i32, %arg1: i32) -> (i32, i32, i32) {
    %c0_i32 = arith.constant 0 : i32
    %c0_i32_0 = arith.constant 0 : i32
    %c0_i32_1 = arith.constant 0 : i32
    return %arg0, %c0_i32, %c0_i32_0 : i32, i32, i32
  }
}

</mosaic_0001>

<llo_original>
// kernel: tpu_custom_call.1
$region0: #{tpu_custom_call.1}
  #allocation0 [shape = 'u32[]', space=smem, size = 0x4, offset = 0x4, fixed_abs, tag = 'smem constant byte address 0x4 - core index']
  #allocation1 [shape = 'u32[144,128]{1,0:T(1,128)}', space=vmem, size = 0x12000, scoped, tag = 'internal scratch']
  %s0 = inlined_call_operand.vmem [shape: f32[256,10], index: 0, kind: input, shape index: {}]
  %s1 = inlined_call_operand.vmem [shape: s32[256,1], index: 1, kind: input, shape index: {}]
  %s2 = inlined_call_operand.hbm [shape: f32[2,8,128], index: 2, kind: output, shape index: {}]
  %s3 = sld [smem:[#allocation0]]
  $region45: #{tpu_custom_call.1} parent=0
    _
  %s5 = ssub.s32 1, %s3
  %s6 = scalar_select 0, %s5, %s3
  $region1: #{tpu_custom_call.1} parent=0
    #allocation2 [shape = 'u8[8192]{0}', space=vmem, size = 0x2000, scoped, tag = 'output window, operand 0']
    #allocation3 [shape = 's32[2]{0}', space=sflag, size = 0x8, scoped, tag = 'scoped memory for tpu_custom_call.1']
    %7 = vsyncpa [#allocation3], 0
    %s8 = scalar_lea.sflag [#allocation3], 1
    %9 = vsyncpa %s8, 0
    loop: start=0, step=1, limit=4
    $region2: #{tpu_custom_call.1} parent=1 // loop_pre_header
      _
    $region3: #{tpu_custom_call.1} parent=1 // loop_header
      %s11 = sphi 0, %s15
      %p12 = scmp.ge.s32.totalorder %s11, 4
      %s18 = sphi 0, %s30
      %s19 = sphi 0, %s26
      %s20 = sphi 0, %s18
      %s21 = sphi 0, %s19
      %s22 = sphi 0, %s20
      %s23 = sphi 0, %s21
      %s35 = sphi 0, %s37
      %s38 = sphi 0, %s35
      %s39 = sphi 0, %s38
      %s55 = sphi 0, %s39
      %s63 = sphi 0, %s65
      %s66 = sphi 0, %s63
      %s67 = sphi 0, %s66
      %s83 = sphi 0, %s67
      %s89 = sphi 0, %s91
      %s92 = sphi 0, %s89
      %s93 = sphi 0, %s92
      %s109 = sphi 0, %s93
    $region4: #{tpu_custom_call.1} parent=1 // loop_header_branch
      %14 = sbr.rel (%p12) target = $region8
    $region5: #{tpu_custom_call.1} parent=1 // loop_body
      %s16 = ssub.s32 %s11, 1
      %s17 = ssub.s32 %s11, 2
      %s24 = sadd.s32 1, %s19
      %p25 = scmp.ge.s32.totalorder %s24, 1
      %s26 = scalar_select %p25, 0, %s24
      %s27 = sadd.s32 1, %s18
      %s28 = scalar_select %p25, %s27, %s18
      %p29 = scmp.ge.s32.totalorder %s28, 2
      %s30 = scalar_select %p29, 0, %s28
      %s31 = sadd.s32 %s18, %s19
      %s32 = sadd.s32 %s30, %s26
      %s33 = ssub.s32 %s31, %s32
      %p34 = scmp.eq.s32.totalorder %s33, 0
      %s36 = sadd.s32 %s35, 1
      %s37 = scalar_select %p34, %s35, %s36
      %p40 = pneg %p34
      %p41 = scmp.eq.s32.totalorder %s11, 1
      %p42 = por %p40, %p41
      %p43 = scmp.ne.s32.totalorder %s35, %s38
      %p44 = scmp.eq.s32.totalorder %s11, 0
      %p45 = por %p43, %p44
      %p46 = scmp.ne.s32.totalorder %s35, %s38
      %p47 = scmp.eq.s32.totalorder %s16, 1
      %p48 = por %p46, %p47
      %p49 = scmp.ne.s32.totalorder %s38, %s39
      %p50 = scmp.eq.s32.totalorder %s16, 0
      %p51 = por %p49, %p50
      %p52 = scmp.ne.s32.totalorder %s38, %s39
      %p53 = scmp.eq.s32.totalorder %s17, 1
      %p54 = por %p52, %p53
      %p56 = scmp.ne.s32.totalorder %s39, %s55
      %p57 = scmp.eq.s32.totalorder %s17, 0
      %p58 = por %p56, %p57
      %s59 = sadd.s32 %s18, %s19
      %s60 = sadd.s32 %s30, %s26
      %s61 = ssub.s32 %s59, %s60
      %p62 = scmp.eq.s32.totalorder %s61, 0
      %s64 = sadd.s32 %s63, 1
      %s65 = scalar_select %p62, %s63, %s64
      %p68 = pneg %p62
      %p69 = scmp.eq.s32.totalorder %s11, 1
      %p70 = por %p68, %p69
      %p71 = scmp.ne.s32.totalorder %s63, %s66
      %p72 = scmp.eq.s32.totalorder %s11, 0
      %p73 = por %p71, %p72
      %p74 = scmp.ne.s32.totalorder %s63, %s66
      %p75 = scmp.eq.s32.totalorder %s16, 1
      %p76 = por %p74, %p75
      %p77 = scmp.ne.s32.totalorder %s66, %s67
      %p78 = scmp.eq.s32.totalorder %s16, 0
      %p79 = por %p77, %p78
      %p80 = scmp.ne.s32.totalorder %s66, %s67
      %p81 = scmp.eq.s32.totalorder %s17, 1
      %p82 = por %p80, %p81
      %p84 = scmp.ne.s32.totalorder %s67, %s83
      %p85 = scmp.eq.s32.totalorder %s17, 0
      %p86 = por %p84, %p85
      %s87 = ssub.s32 %s18, %s30
      %p88 = scmp.eq.s32.totalorder %s87, 0
      %s90 = sadd.s32 %s89, 1
      %s91 = scalar_select %p88, %s89, %s90
      %p94 = pneg %p88
      %p95 = scmp.eq.s32.totalorder %s11, 1
      %p96 = por %p94, %p95
      %p97 = scmp.ne.s32.totalorder %s89, %s92
      %p98 = scmp.eq.s32.totalorder %s11, 0
      %p99 = por %p97, %p98
      %p100 = scmp.ne.s32.totalorder %s89, %s92
      %p101 = scmp.eq.s32.totalorder %s16, 1
      %p102 = por %p100, %p101
      %p103 = scmp.ne.s32.totalorder %s92, %s93
      %p104 = scmp.eq.s32.totalorder %s16, 0
      %p105 = por %p103, %p104
      %p106 = scmp.ne.s32.totalorder %s92, %s93
      %p107 = scmp.eq.s32.totalorder %s17, 1
      %p108 = por %p106, %p107
      %p110 = scmp.ne.s32.totalorder %s93, %s109
      %p111 = scmp.eq.s32.totalorder %s17, 0
      %p112 = por %p110, %p111
      %p113 = scmp.le.s32.totalorder 1, %s11
      %p114 = scmp.lt.s32.totalorder %s11, 3
      %p115 = pnand %p113, %p114
      %p116 = pneg %p115
      // Predicated region
      $region9: #{tpu_custom_call.1} parent=5 // pred_check
        _
      $region10: #{tpu_custom_call.1} parent=5 // pred_check_branch
        %118 = sbr.rel (%p115) target = $region12
      $region11: #{tpu_custom_call.1} parent=5 // pred_region
        %s119 = ssub.s32 %s11, 1
      $region12: #{tpu_custom_call.1} parent=5 // pred_fallthru
        _
      %p120 = scmp.lt.s32.totalorder %s11, 2
      // Predicated region
      $region13: #{tpu_custom_call.1} parent=5 // pred_check
        %p121 = pneg %p120
      $region14: #{tpu_custom_call.1} parent=5 // pred_check_branch
        %123 = sbr.rel (%p121) target = $region16
      $region15: #{tpu_custom_call.1} parent=5 // pred_region
        // Predicated region
        $region17: #{tpu_custom_call.1} parent=15 // pred_check
          %p124 = pneg %p45
        $region18: #{tpu_custom_call.1} parent=15 // pred_check_branch
          %126 = sbr.rel (%p124) target = $region20
        $region19: #{tpu_custom_call.1} parent=15 // pred_region
          %s127 = sadd.s32 %s18, %s19
          %s128 = smul.u32 16, %s127
          %p129 = scmp.lt.s32.totalorder %s128, 31
          %s130 = scalar_select %p129, %s128, 31
          %s131 = smul.addr %s130, 8
          %s132 = scalar_lea.vmem %s0, %s131
          %s133 = sadd.s32 %s18, %s19
          %s134 = smul.u32 16, %s133
        $region20: #{tpu_custom_call.1} parent=15 // pred_fallthru
          _
        // Predicated region
        $region21: #{tpu_custom_call.1} parent=15 // pred_check
          %p135 = pneg %p73
        $region22: #{tpu_custom_call.1} parent=15 // pred_check_branch
          %137 = sbr.rel (%p135) target = $region24
        $region23: #{tpu_custom_call.1} parent=15 // pred_region
          %s138 = sadd.s32 %s18, %s19
          %s139 = smul.u32 16, %s138
          %p140 = scmp.lt.s32.totalorder %s139, 31
          %s141 = scalar_select %p140, %s139, 31
          %s142 = smul.addr %s141, 8
          %s143 = scalar_lea.vmem %s1, %s142
          %s144 = sadd.s32 %s18, %s19
          %s145 = smul.u32 16, %s144
        $region24: #{tpu_custom_call.1} parent=15 // pred_fallthru
          _
      $region16: #{tpu_custom_call.1} parent=5 // pred_fallthru
        _
      %p146 = scmp.le.s32.totalorder 1, %s11
      %p147 = scmp.lt.s32.totalorder %s11, 3
      %p148 = pnand %p146, %p147
      %p149 = pneg %p148
      // Predicated region
      $region25: #{tpu_custom_call.1} parent=5 // pred_check
        _
      $region26: #{tpu_custom_call.1} parent=5 // pred_check_branch
        %151 = sbr.rel (%p148) target = $region28
      $region27: #{tpu_custom_call.1} parent=5 // pred_region
        %s152 = ssub.s32 %s11, 1
        %s153 = sadd.s32 %s20, %s21
        %s154 = smul.u32 16, %s153
        %p155 = scmp.lt.s32.totalorder %s154, 31
        %s156 = scalar_select %p155, %s154, 31
        %s157 = smul.addr %s156, 8
        %s158 = scalar_lea.vmem %s0, %s157
        %p159 = pneg %p51
        %p160 = pneg %p48
        %s161 = sadd.s32 %s20, %s21
        %s162 = smul.u32 16, %s161
        %p163 = scmp.lt.s32.totalorder %s162, 31
        %s164 = scalar_select %p163, %s162, 31
        %s165 = smul.addr %s164, 8
        %s166 = scalar_lea.vmem %s1, %s165
        %p167 = pneg %p79
        %p168 = pneg %p76
        %p169 = pneg %p105
        %p170 = pneg %p102
        %s171 = sand.u32 %s92, 1
        %s172 = scalar_lea.sflag [#allocation3], %s171
        %s173 = sand.u32 %s92, 1
        %s174 = smul.addr %s173, 8
        %s175 = scalar_lea.vmem [#allocation2], %s174
        %s176 = sadd.s32 %s20, %s21
        %s177 = smul.u32 16, %s176
        %p178 = scmp.lt.s32.totalorder %s177, 31
        %s179 = scalar_select %p178, %s177, 31
        %s180 = smul.addr %s179, 8
        %s181 = scalar_lea.vmem %s0, %s180
        %s182 = sadd.s32 %s20, %s21
        %s183 = smul.u32 16, %s182
        %s184 = sadd.s32 %s20, %s21
        %s185 = smul.u32 16, %s184
        %p186 = scmp.lt.s32.totalorder %s185, 31
        %s187 = scalar_select %p186, %s185, 31
        %s188 = smul.addr %s187, 8
        %s189 = scalar_lea.vmem %s1, %s188
        %s190 = sadd.s32 %s20, %s21
        %s191 = smul.u32 16, %s190
        %p192 = scmp.eq.s32.totalorder %s21, 0
        // Predicated region
        $region29: #{tpu_custom_call.1} parent=27 // pred_check
          %p193 = pneg %p192
        $region30: #{tpu_custom_call.1} parent=27 // pred_check_branch
          %195 = sbr.rel (%p193) target = $region32
        $region31: #{tpu_custom_call.1} parent=27 // pred_region
          %196 = vst [vmem:[%s175] sm:$0xff] 0.0
        $region32: #{tpu_custom_call.1} parent=27 // pred_fallthru
          _
        %v197 = vld [vmem:[%s181] sm:$0xff]
        %v198 = vld [vmem:[%s181 + $0x8] sm:$0xff]
        %v199 = vld [vmem:[%s181 + $0x10] sm:$0xff]
        %v200 = vld [vmem:[%s181 + $0x18] sm:$0xff]
        %v201 = vld [vmem:[%s181 + $0x20] sm:$0xff]
        %v202 = vld [vmem:[%s181 + $0x28] sm:$0xff]
        %v203 = vld [vmem:[%s181 + $0x30] sm:$0xff]
        %v204 = vld [vmem:[%s181 + $0x38] sm:$0xff]
        %v205 = vld [vmem:[%s181 + $0x40] sm:$0xff]
        %v206 = vld [vmem:[%s181 + $0x48] sm:$0xff]
        %v207 = vld [vmem:[%s181 + $0x50] sm:$0xff]
        %v208 = vld [vmem:[%s181 + $0x58] sm:$0xff]
        %v209 = vld [vmem:[%s181 + $0x60] sm:$0xff]
        %v210 = vld [vmem:[%s181 + $0x68] sm:$0xff]
        %v211 = vld [vmem:[%s181 + $0x70] sm:$0xff]
        %v212 = vld [vmem:[%s181 + $0x78] sm:$0xff]
        %v213 = vld [vmem:[%s189] sm:$0xff]
        %v214 = vld [vmem:[%s189 + $0x8] sm:$0xff]
        %v215 = vld [vmem:[%s189 + $0x10] sm:$0xff]
        %v216 = vld [vmem:[%s189 + $0x18] sm:$0xff]
        %v217 = vld [vmem:[%s189 + $0x20] sm:$0xff]
        %v218 = vld [vmem:[%s189 + $0x28] sm:$0xff]
        %v219 = vld [vmem:[%s189 + $0x30] sm:$0xff]
        %v220 = vld [vmem:[%s189 + $0x38] sm:$0xff]
        %v221 = vld [vmem:[%s189 + $0x40] sm:$0xff]
        %v222 = vld [vmem:[%s189 + $0x48] sm:$0xff]
        %v223 = vld [vmem:[%s189 + $0x50] sm:$0xff]
        %v224 = vld [vmem:[%s189 + $0x58] sm:$0xff]
        %v225 = vld [vmem:[%s189 + $0x60] sm:$0xff]
        %v226 = vld [vmem:[%s189 + $0x68] sm:$0xff]
        %v227 = vld [vmem:[%s189 + $0x70] sm:$0xff]
        %v228 = vld [vmem:[%s189 + $0x78] sm:$0xff]
        %vm229 = vcmask 80896
        %v230 = vsel %vm229, %v197, -inf
        %231 = vmax.xlane.f32.xlu0 %v230
        %v232 = vpop.xlane.xlu0 %231
        %v233 = vsel %vm229, %v198, -inf
        %234 = vmax.xlane.f32.xlu0 %v233
        %v235 = vpop.xlane.xlu0 %234
        %v236 = vsel %vm229, %v199, -inf
        %237 = vmax.xlane.f32.xlu0 %v236
        %v238 = vpop.xlane.xlu0 %237
        %v239 = vsel %vm229, %v200, -inf
        %240 = vmax.xlane.f32.xlu0 %v239
        %v241 = vpop.xlane.xlu0 %240
        %v242 = vsel %vm229, %v201, -inf
        %243 = vmax.xlane.f32.xlu0 %v242
        %v244 = vpop.xlane.xlu0 %243
        %v245 = vsel %vm229, %v202, -inf
        %246 = vmax.xlane.f32.xlu0 %v245
        %v247 = vpop.xlane.xlu0 %246
        %v248 = vsel %vm229, %v203, -inf
        %249 = vmax.xlane.f32.xlu0 %v248
        %v250 = vpop.xlane.xlu0 %249
        %v251 = vsel %vm229, %v204, -inf
        %252 = vmax.xlane.f32.xlu0 %v251
        %v253 = vpop.xlane.xlu0 %252
        %v254 = vsel %vm229, %v205, -inf
        %255 = vmax.xlane.f32.xlu0 %v254
        %v256 = vpop.xlane.xlu0 %255
        %v257 = vsel %vm229, %v206, -inf
        %258 = vmax.xlane.f32.xlu0 %v257
        %v259 = vpop.xlane.xlu0 %258
        %v260 = vsel %vm229, %v207, -inf
        %261 = vmax.xlane.f32.xlu0 %v260
        %v262 = vpop.xlane.xlu0 %261
        %v263 = vsel %vm229, %v208, -inf
        %264 = vmax.xlane.f32.xlu0 %v263
        %v265 = vpop.xlane.xlu0 %264
        %v266 = vsel %vm229, %v209, -inf
        %267 = vmax.xlane.f32.xlu0 %v266
        %v268 = vpop.xlane.xlu0 %267
        %v269 = vsel %vm229, %v210, -inf
        %270 = vmax.xlane.f32.xlu0 %v269
        %v271 = vpop.xlane.xlu0 %270
        %v272 = vsel %vm229, %v211, -inf
        %273 = vmax.xlane.f32.xlu0 %v272
        %v274 = vpop.xlane.xlu0 %273
        %v275 = vsel %vm229, %v212, -inf
        %276 = vmax.xlane.f32.xlu0 %v275
        %v277 = vpop.xlane.xlu0 %276
        %v278 = vsub.f32 %v197, %v232
        %v279 = vsub.f32 %v198, %v235
        %v280 = vsub.f32 %v199, %v238
        %v281 = vsub.f32 %v200, %v241
        %v282 = vsub.f32 %v201, %v244
        %v283 = vsub.f32 %v202, %v247
        %v284 = vsub.f32 %v203, %v250
        %v285 = vsub.f32 %v204, %v253
        %v286 = vsub.f32 %v205, %v256
        %v287 = vsub.f32 %v206, %v259
        %v288 = vsub.f32 %v207, %v262
        %v289 = vsub.f32 %v208, %v265
        %v290 = vsub.f32 %v209, %v268
        %v291 = vsub.f32 %v210, %v271
        %v292 = vsub.f32 %v211, %v274
        %v293 = vsub.f32 %v212, %v277
        %v294 = vmul.f32 %v278, 1.442695
        %v295 = vpow.pop %v294
        %v296 = vmul.f32 %v279, 1.442695
        %v297 = vpow.pop %v296
        %v298 = vmul.f32 %v280, 1.442695
        %v299 = vpow.pop %v298
        %v300 = vmul.f32 %v281, 1.442695
        %v301 = vpow.pop %v300
        %v302 = vmul.f32 %v282, 1.442695
        %v303 = vpow.pop %v302
        %v304 = vmul.f32 %v283, 1.442695
        %v305 = vpow.pop %v304
        %v306 = vmul.f32 %v284, 1.442695
        %v307 = vpow.pop %v306
        %v308 = vmul.f32 %v285, 1.442695
        %v309 = vpow.pop %v308
        %v310 = vmul.f32 %v286, 1.442695
        %v311 = vpow.pop %v310
        %v312 = vmul.f32 %v287, 1.442695
        %v313 = vpow.pop %v312
        %v314 = vmul.f32 %v288, 1.442695
        %v315 = vpow.pop %v314
        %v316 = vmul.f32 %v289, 1.442695
        %v317 = vpow.pop %v316
        %v318 = vmul.f32 %v290, 1.442695
        %v319 = vpow.pop %v318
        %v320 = vmul.f32 %v291, 1.442695
        %v321 = vpow.pop %v320
        %v322 = vmul.f32 %v292, 1.442695
        %v323 = vpow.pop %v322
        %v324 = vmul.f32 %v293, 1.442695
        %v325 = vpow.pop %v324
        %v326 = vsel %vm229, %v295, 0.0
        %327 = vadd.xlane.f32.xlu0 %v326
        %v328 = vpop.xlane.xlu0 %327
        %v329 = vsel %vm229, %v297, 0.0
        %330 = vadd.xlane.f32.xlu0 %v329
        %v331 = vpop.xlane.xlu0 %330
        %v332 = vsel %vm229, %v299, 0.0
        %333 = vadd.xlane.f32.xlu0 %v332
        %v334 = vpop.xlane.xlu0 %333
        %v335 = vsel %vm229, %v301, 0.0
        %336 = vadd.xlane.f32.xlu0 %v335
        %v337 = vpop.xlane.xlu0 %336
        %v338 = vsel %vm229, %v303, 0.0
        %339 = vadd.xlane.f32.xlu0 %v338
        %v340 = vpop.xlane.xlu0 %339
        %v341 = vsel %vm229, %v305, 0.0
        %342 = vadd.xlane.f32.xlu0 %v341
        %v343 = vpop.xlane.xlu0 %342
        %v344 = vsel %vm229, %v307, 0.0
        %345 = vadd.xlane.f32.xlu0 %v344
        %v346 = vpop.xlane.xlu0 %345
        %v347 = vsel %vm229, %v309, 0.0
        %348 = vadd.xlane.f32.xlu0 %v347
        %v349 = vpop.xlane.xlu0 %348
        %v350 = vsel %vm229, %v311, 0.0
        %351 = vadd.xlane.f32.xlu0 %v350
        %v352 = vpop.xlane.xlu0 %351
        %v353 = vsel %vm229, %v313, 0.0
        %354 = vadd.xlane.f32.xlu0 %v353
        %v355 = vpop.xlane.xlu0 %354
        %v356 = vsel %vm229, %v315, 0.0
        %357 = vadd.xlane.f32.xlu0 %v356
        %v358 = vpop.xlane.xlu0 %357
        %v359 = vsel %vm229, %v317, 0.0
        %360 = vadd.xlane.f32.xlu0 %v359
        %v361 = vpop.xlane.xlu0 %360
        %v362 = vsel %vm229, %v319, 0.0
        %363 = vadd.xlane.f32.xlu0 %v362
        %v364 = vpop.xlane.xlu0 %363
        %v365 = vsel %vm229, %v321, 0.0
        %366 = vadd.xlane.f32.xlu0 %v365
        %v367 = vpop.xlane.xlu0 %366
        %v368 = vsel %vm229, %v323, 0.0
        %369 = vadd.xlane.f32.xlu0 %v368
        %v370 = vpop.xlane.xlu0 %369
        %v371 = vsel %vm229, %v325, 0.0
        %372 = vadd.xlane.f32.xlu0 %v371
        %v373 = vpop.xlane.xlu0 %372
        %v374 = vrcp.pop %v328
        %v375 = vmul.f32 1.0, %v374
        %v376 = vrcp.pop %v331
        %v377 = vmul.f32 1.0, %v376
        %v378 = vrcp.pop %v334
        %v379 = vmul.f32 1.0, %v378
        %v380 = vrcp.pop %v337
        %v381 = vmul.f32 1.0, %v380
        %v382 = vrcp.pop %v340
        %v383 = vmul.f32 1.0, %v382
        %v384 = vrcp.pop %v343
        %v385 = vmul.f32 1.0, %v384
        %v386 = vrcp.pop %v346
        %v387 = vmul.f32 1.0, %v386
        %v388 = vrcp.pop %v349
        %v389 = vmul.f32 1.0, %v388
        %v390 = vrcp.pop %v352
        %v391 = vmul.f32 1.0, %v390
        %v392 = vrcp.pop %v355
        %v393 = vmul.f32 1.0, %v392
        %v394 = vrcp.pop %v358
        %v395 = vmul.f32 1.0, %v394
        %v396 = vrcp.pop %v361
        %v397 = vmul.f32 1.0, %v396
        %v398 = vrcp.pop %v364
        %v399 = vmul.f32 1.0, %v398
        %v400 = vrcp.pop %v367
        %v401 = vmul.f32 1.0, %v400
        %v402 = vrcp.pop %v370
        %v403 = vmul.f32 1.0, %v402
        %v404 = vrcp.pop %v373
        %v405 = vmul.f32 1.0, %v404
        %v406 = vlaneseq
        %v407 = vand.u32 %v406, 127
        %vm408 = vcmp.eq.f32.partialorder %v197, %v232
        %vm409 = vcmp.eq.f32.partialorder %v198, %v235
        %vm410 = vcmp.eq.f32.partialorder %v199, %v238
        %vm411 = vcmp.eq.f32.partialorder %v200, %v241
        %vm412 = vcmp.eq.f32.partialorder %v201, %v244
        %vm413 = vcmp.eq.f32.partialorder %v202, %v247
        %vm414 = vcmp.eq.f32.partialorder %v203, %v250
        %vm415 = vcmp.eq.f32.partialorder %v204, %v253
        %vm416 = vcmp.eq.f32.partialorder %v205, %v256
        %vm417 = vcmp.eq.f32.partialorder %v206, %v259
        %vm418 = vcmp.eq.f32.partialorder %v207, %v262
        %vm419 = vcmp.eq.f32.partialorder %v208, %v265
        %vm420 = vcmp.eq.f32.partialorder %v209, %v268
        %vm421 = vcmp.eq.f32.partialorder %v210, %v271
        %vm422 = vcmp.eq.f32.partialorder %v211, %v274
        %vm423 = vcmp.eq.f32.partialorder %v212, %v277
        %v424 = vsel %vm408, %v407, 10
        %v425 = vsel %vm409, %v407, 10
        %v426 = vsel %vm410, %v407, 10
        %v427 = vsel %vm411, %v407, 10
        %v428 = vsel %vm412, %v407, 10
        %v429 = vsel %vm413, %v407, 10
        %v430 = vsel %vm414, %v407, 10
        %v431 = vsel %vm415, %v407, 10
        %v432 = vsel %vm416, %v407, 10
        %v433 = vsel %vm417, %v407, 10
        %v434 = vsel %vm418, %v407, 10
        %v435 = vsel %vm419, %v407, 10
        %v436 = vsel %vm420, %v407, 10
        %v437 = vsel %vm421, %v407, 10
        %v438 = vsel %vm422, %v407, 10
        %v439 = vsel %vm423, %v407, 10
        %v440 = vsel %vm229, %v424, 2147483647
        %v441 = vand.u32 %v440, 65535
        %v442 = vshra.s32 %v440, 16
        %v443 = vcvt.s32.f32 %v441
        %v444 = vcvt.s32.f32 %v442
        %445 = vmin.xlane.f32.xlu0 %v444
        %v446 = vpop.xlane.xlu0 %445
        %vm447 = vcmp.eq.f32.partialorder %v444, %v446
        %v448 = vsel %vm447, %v443, inf
        %449 = vmin.xlane.f32.xlu0 %v448
        %v450 = vpop.xlane.xlu0 %449
        %v451 = vcvt.f32.s32 %v450
        %v452 = vcvt.f32.s32 %v446
        %v453 = vshll.u32 %v452, 16
        %v454 = vadd.s32 %v453, %v451
        %v455 = vsel %vm229, %v425, 2147483647
        %v456 = vand.u32 %v455, 65535
        %v457 = vshra.s32 %v455, 16
        %v458 = vcvt.s32.f32 %v456
        %v459 = vcvt.s32.f32 %v457
        %460 = vmin.xlane.f32.xlu0 %v459
        %v461 = vpop.xlane.xlu0 %460
        %vm462 = vcmp.eq.f32.partialorder %v459, %v461
        %v463 = vsel %vm462, %v458, inf
        %464 = vmin.xlane.f32.xlu0 %v463
        %v465 = vpop.xlane.xlu0 %464
        %v466 = vcvt.f32.s32 %v465
        %v467 = vcvt.f32.s32 %v461
        %v468 = vshll.u32 %v467, 16
        %v469 = vadd.s32 %v468, %v466
        %v470 = vsel %vm229, %v426, 2147483647
        %v471 = vand.u32 %v470, 65535
        %v472 = vshra.s32 %v470, 16
        %v473 = vcvt.s32.f32 %v471
        %v474 = vcvt.s32.f32 %v472
        %475 = vmin.xlane.f32.xlu0 %v474
        %v476 = vpop.xlane.xlu0 %475
        %vm477 = vcmp.eq.f32.partialorder %v474, %v476
        %v478 = vsel %vm477, %v473, inf
        %479 = vmin.xlane.f32.xlu0 %v478
        %v480 = vpop.xlane.xlu0 %479
        %v481 = vcvt.f32.s32 %v480
        %v482 = vcvt.f32.s32 %v476
        %v483 = vshll.u32 %v482, 16
        %v484 = vadd.s32 %v483, %v481
        %v485 = vsel %vm229, %v427, 2147483647
        %v486 = vand.u32 %v485, 65535
        %v487 = vshra.s32 %v485, 16
        %v488 = vcvt.s32.f32 %v486
        %v489 = vcvt.s32.f32 %v487
        %490 = vmin.xlane.f32.xlu0 %v489
        %v491 = vpop.xlane.xlu0 %490
        %vm492 = vcmp.eq.f32.partialorder %v489, %v491
        %v493 = vsel %vm492, %v488, inf
        %494 = vmin.xlane.f32.xlu0 %v493
        %v495 = vpop.xlane.xlu0 %494
        %v496 = vcvt.f32.s32 %v495
        %v497 = vcvt.f32.s32 %v491
        %v498 = vshll.u32 %v497, 16
        %v499 = vadd.s32 %v498, %v496
        %v500 = vsel %vm229, %v428, 2147483647
        %v501 = vand.u32 %v500, 65535
        %v502 = vshra.s32 %v500, 16
        %v503 = vcvt.s32.f32 %v501
        %v504 = vcvt.s32.f32 %v502
        %505 = vmin.xlane.f32.xlu0 %v504
        %v506 = vpop.xlane.xlu0 %505
        %vm507 = vcmp.eq.f32.partialorder %v504, %v506
        %v508 = vsel %vm507, %v503, inf
        %509 = vmin.xlane.f32.xlu0 %v508
        %v510 = vpop.xlane.xlu0 %509
        %v511 = vcvt.f32.s32 %v510
        %v512 = vcvt.f32.s32 %v506
        %v513 = vshll.u32 %v512, 16
        %v514 = vadd.s32 %v513, %v511
        %v515 = vsel %vm229, %v429, 2147483647
        %v516 = vand.u32 %v515, 65535
        %v517 = vshra.s32 %v515, 16
        %v518 = vcvt.s32.f32 %v516
        %v519 = vcvt.s32.f32 %v517
        %520 = vmin.xlane.f32.xlu0 %v519
        %v521 = vpop.xlane.xlu0 %520
        %vm522 = vcmp.eq.f32.partialorder %v519, %v521
        %v523 = vsel %vm522, %v518, inf
        %524 = vmin.xlane.f32.xlu0 %v523
        %v525 = vpop.xlane.xlu0 %524
        %v526 = vcvt.f32.s32 %v525
        %v527 = vcvt.f32.s32 %v521
        %v528 = vshll.u32 %v527, 16
        %v529 = vadd.s32 %v528, %v526
        %v530 = vsel %vm229, %v430, 2147483647
        %v531 = vand.u32 %v530, 65535
        %v532 = vshra.s32 %v530, 16
        %v533 = vcvt.s32.f32 %v531
        %v534 = vcvt.s32.f32 %v532
        %535 = vmin.xlane.f32.xlu0 %v534
        %v536 = vpop.xlane.xlu0 %535
        %vm537 = vcmp.eq.f32.partialorder %v534, %v536
        %v538 = vsel %vm537, %v533, inf
        %539 = vmin.xlane.f32.xlu0 %v538
        %v540 = vpop.xlane.xlu0 %539
        %v541 = vcvt.f32.s32 %v540
        %v542 = vcvt.f32.s32 %v536
        %v543 = vshll.u32 %v542, 16
        %v544 = vadd.s32 %v543, %v541
        %v545 = vsel %vm229, %v431, 2147483647
        %v546 = vand.u32 %v545, 65535
        %v547 = vshra.s32 %v545, 16
        %v548 = vcvt.s32.f32 %v546
        %v549 = vcvt.s32.f32 %v547
        %550 = vmin.xlane.f32.xlu0 %v549
        %v551 = vpop.xlane.xlu0 %550
        %vm552 = vcmp.eq.f32.partialorder %v549, %v551
        %v553 = vsel %vm552, %v548, inf
        %554 = vmin.xlane.f32.xlu0 %v553
        %v555 = vpop.xlane.xlu0 %554
        %v556 = vcvt.f32.s32 %v555
        %v557 = vcvt.f32.s32 %v551
        %v558 = vshll.u32 %v557, 16
        %v559 = vadd.s32 %v558, %v556
        %v560 = vsel %vm229, %v432, 2147483647
        %v561 = vand.u32 %v560, 65535
        %v562 = vshra.s32 %v560, 16
        %v563 = vcvt.s32.f32 %v561
        %v564 = vcvt.s32.f32 %v562
        %565 = vmin.xlane.f32.xlu0 %v564
        %v566 = vpop.xlane.xlu0 %565
        %vm567 = vcmp.eq.f32.partialorder %v564, %v566
        %v568 = vsel %vm567, %v563, inf
        %569 = vmin.xlane.f32.xlu0 %v568
        %v570 = vpop.xlane.xlu0 %569
        %v571 = vcvt.f32.s32 %v570
        %v572 = vcvt.f32.s32 %v566
        %v573 = vshll.u32 %v572, 16
        %v574 = vadd.s32 %v573, %v571
        %v575 = vsel %vm229, %v433, 2147483647
        %v576 = vand.u32 %v575, 65535
        %v577 = vshra.s32 %v575, 16
        %v578 = vcvt.s32.f32 %v576
        %v579 = vcvt.s32.f32 %v577
        %580 = vmin.xlane.f32.xlu0 %v579
        %v581 = vpop.xlane.xlu0 %580
        %vm582 = vcmp.eq.f32.partialorder %v579, %v581
        %v583 = vsel %vm582, %v578, inf
        %584 = vmin.xlane.f32.xlu0 %v583
        %v585 = vpop.xlane.xlu0 %584
        %v586 = vcvt.f32.s32 %v585
        %v587 = vcvt.f32.s32 %v581
        %v588 = vshll.u32 %v587, 16
        %v589 = vadd.s32 %v588, %v586
        %v590 = vsel %vm229, %v434, 2147483647
        %v591 = vand.u32 %v590, 65535
        %v592 = vshra.s32 %v590, 16
        %v593 = vcvt.s32.f32 %v591
        %v594 = vcvt.s32.f32 %v592
        %595 = vmin.xlane.f32.xlu0 %v594
        %v596 = vpop.xlane.xlu0 %595
        %vm597 = vcmp.eq.f32.partialorder %v594, %v596
        %v598 = vsel %vm597, %v593, inf
        %599 = vmin.xlane.f32.xlu0 %v598
        %v600 = vpop.xlane.xlu0 %599
        %v601 = vcvt.f32.s32 %v600
        %v602 = vcvt.f32.s32 %v596
        %v603 = vshll.u32 %v602, 16
        %v604 = vadd.s32 %v603, %v601
        %v605 = vsel %vm229, %v435, 2147483647
        %v606 = vand.u32 %v605, 65535
        %v607 = vshra.s32 %v605, 16
        %v608 = vcvt.s32.f32 %v606
        %v609 = vcvt.s32.f32 %v607
        %610 = vmin.xlane.f32.xlu0 %v609
        %v611 = vpop.xlane.xlu0 %610
        %vm612 = vcmp.eq.f32.partialorder %v609, %v611
        %v613 = vsel %vm612, %v608, inf
        %614 = vmin.xlane.f32.xlu0 %v613
        %v615 = vpop.xlane.xlu0 %614
        %v616 = vcvt.f32.s32 %v615
        %v617 = vcvt.f32.s32 %v611
        %v618 = vshll.u32 %v617, 16
        %v619 = vadd.s32 %v618, %v616
        %v620 = vsel %vm229, %v436, 2147483647
        %v621 = vand.u32 %v620, 65535
        %v622 = vshra.s32 %v620, 16
        %v623 = vcvt.s32.f32 %v621
        %v624 = vcvt.s32.f32 %v622
        %625 = vmin.xlane.f32.xlu0 %v624
        %v626 = vpop.xlane.xlu0 %625
        %vm627 = vcmp.eq.f32.partialorder %v624, %v626
        %v628 = vsel %vm627, %v623, inf
        %629 = vmin.xlane.f32.xlu0 %v628
        %v630 = vpop.xlane.xlu0 %629
        %v631 = vcvt.f32.s32 %v630
        %v632 = vcvt.f32.s32 %v626
        %v633 = vshll.u32 %v632, 16
        %v634 = vadd.s32 %v633, %v631
        %v635 = vsel %vm229, %v437, 2147483647
        %v636 = vand.u32 %v635, 65535
        %v637 = vshra.s32 %v635, 16
        %v638 = vcvt.s32.f32 %v636
        %v639 = vcvt.s32.f32 %v637
        %640 = vmin.xlane.f32.xlu0 %v639
        %v641 = vpop.xlane.xlu0 %640
        %vm642 = vcmp.eq.f32.partialorder %v639, %v641
        %v643 = vsel %vm642, %v638, inf
        %644 = vmin.xlane.f32.xlu0 %v643
        %v645 = vpop.xlane.xlu0 %644
        %v646 = vcvt.f32.s32 %v645
        %v647 = vcvt.f32.s32 %v641
        %v648 = vshll.u32 %v647, 16
        %v649 = vadd.s32 %v648, %v646
        %v650 = vsel %vm229, %v438, 2147483647
        %v651 = vand.u32 %v650, 65535
        %v652 = vshra.s32 %v650, 16
        %v653 = vcvt.s32.f32 %v651
        %v654 = vcvt.s32.f32 %v652
        %655 = vmin.xlane.f32.xlu0 %v654
        %v656 = vpop.xlane.xlu0 %655
        %vm657 = vcmp.eq.f32.partialorder %v654, %v656
        %v658 = vsel %vm657, %v653, inf
        %659 = vmin.xlane.f32.xlu0 %v658
        %v660 = vpop.xlane.xlu0 %659
        %v661 = vcvt.f32.s32 %v660
        %v662 = vcvt.f32.s32 %v656
        %v663 = vshll.u32 %v662, 16
        %v664 = vadd.s32 %v663, %v661
        %v665 = vsel %vm229, %v439, 2147483647
        %v666 = vand.u32 %v665, 65535
        %v667 = vshra.s32 %v665, 16
        %v668 = vcvt.s32.f32 %v666
        %v669 = vcvt.s32.f32 %v667
        %670 = vmin.xlane.f32.xlu0 %v669
        %v671 = vpop.xlane.xlu0 %670
        %vm672 = vcmp.eq.f32.partialorder %v669, %v671
        %v673 = vsel %vm672, %v668, inf
        %674 = vmin.xlane.f32.xlu0 %v673
        %v675 = vpop.xlane.xlu0 %674
        %v676 = vcvt.f32.s32 %v675
        %v677 = vcvt.f32.s32 %v671
        %v678 = vshll.u32 %v677, 16
        %v679 = vadd.s32 %v678, %v676
        %vm680 = vcmp.eq.s32.totalorder %v454, %v213
        %vm681 = vcmp.eq.s32.totalorder %v469, %v214
        %vm682 = vcmp.eq.s32.totalorder %v484, %v215
        %vm683 = vcmp.eq.s32.totalorder %v499, %v216
        %vm684 = vcmp.eq.s32.totalorder %v514, %v217
        %vm685 = vcmp.eq.s32.totalorder %v529, %v218
        %vm686 = vcmp.eq.s32.totalorder %v544, %v219
        %vm687 = vcmp.eq.s32.totalorder %v559, %v220
        %vm688 = vcmp.eq.s32.totalorder %v574, %v221
        %vm689 = vcmp.eq.s32.totalorder %v589, %v222
        %vm690 = vcmp.eq.s32.totalorder %v604, %v223
        %vm691 = vcmp.eq.s32.totalorder %v619, %v224
        %vm692 = vcmp.eq.s32.totalorder %v634, %v225
        %vm693 = vcmp.eq.s32.totalorder %v649, %v226
        %vm694 = vcmp.eq.s32.totalorder %v664, %v227
        %vm695 = vcmp.eq.s32.totalorder %v679, %v228
        %v696 = vsel %vm680, 1, 0
        %v697 = vsel %vm681, 1, 0
        %v698 = vsel %vm682, 1, 0
        %v699 = vsel %vm683, 1, 0
        %v700 = vsel %vm684, 1, 0
        %v701 = vsel %vm685, 1, 0
        %v702 = vsel %vm686, 1, 0
        %v703 = vsel %vm687, 1, 0
        %v704 = vsel %vm688, 1, 0
        %v705 = vsel %vm689, 1, 0
        %v706 = vsel %vm690, 1, 0
        %v707 = vsel %vm691, 1, 0
        %v708 = vsel %vm692, 1, 0
        %v709 = vsel %vm693, 1, 0
        %v710 = vsel %vm694, 1, 0
        %v711 = vsel %vm695, 1, 0
        %v712 = vcvt.s32.f32 %v696
        %v713 = vcvt.s32.f32 %v697
        %v714 = vcvt.s32.f32 %v698
        %v715 = vcvt.s32.f32 %v699
        %v716 = vcvt.s32.f32 %v700
        %v717 = vcvt.s32.f32 %v701
        %v718 = vcvt.s32.f32 %v702
        %v719 = vcvt.s32.f32 %v703
        %v720 = vcvt.s32.f32 %v704
        %v721 = vcvt.s32.f32 %v705
        %v722 = vcvt.s32.f32 %v706
        %v723 = vcvt.s32.f32 %v707
        %v724 = vcvt.s32.f32 %v708
        %v725 = vcvt.s32.f32 %v709
        %v726 = vcvt.s32.f32 %v710
        %v727 = vcvt.s32.f32 %v711
        %v728 = vmul.f32 %v375, 15.0
        %v729 = vmul.f32 %v377, 15.0
        %v730 = vmul.f32 %v379, 15.0
        %v731 = vmul.f32 %v381, 15.0
        %v732 = vmul.f32 %v383, 15.0
        %v733 = vmul.f32 %v385, 15.0
        %v734 = vmul.f32 %v387, 15.0
        %v735 = vmul.f32 %v389, 15.0
        %v736 = vmul.f32 %v391, 15.0
        %v737 = vmul.f32 %v393, 15.0
        %v738 = vmul.f32 %v395, 15.0
        %v739 = vmul.f32 %v397, 15.0
        %v740 = vmul.f32 %v399, 15.0
        %v741 = vmul.f32 %v401, 15.0
        %v742 = vmul.f32 %v403, 15.0
        %v743 = vmul.f32 %v405, 15.0
        %v744 = vceil.f32 %v728
        %v745 = vceil.f32 %v729
        %v746 = vceil.f32 %v730
        %v747 = vceil.f32 %v731
        %v748 = vceil.f32 %v732
        %v749 = vceil.f32 %v733
        %v750 = vceil.f32 %v734
        %v751 = vceil.f32 %v735
        %v752 = vceil.f32 %v736
        %v753 = vceil.f32 %v737
        %v754 = vceil.f32 %v738
        %v755 = vceil.f32 %v739
        %v756 = vceil.f32 %v740
        %v757 = vceil.f32 %v741
        %v758 = vceil.f32 %v742
        %v759 = vceil.f32 %v743
        %v760 = vcvt.f32.s32.to.zero.pseudo %v744
        %v761 = vcvt.f32.s32.to.zero.pseudo %v745
        %v762 = vcvt.f32.s32.to.zero.pseudo %v746
        %v763 = vcvt.f32.s32.to.zero.pseudo %v747
        %v764 = vcvt.f32.s32.to.zero.pseudo %v748
        %v765 = vcvt.f32.s32.to.zero.pseudo %v749
        %v766 = vcvt.f32.s32.to.zero.pseudo %v750
        %v767 = vcvt.f32.s32.to.zero.pseudo %v751
        %v768 = vcvt.f32.s32.to.zero.pseudo %v752
        %v769 = vcvt.f32.s32.to.zero.pseudo %v753
        %v770 = vcvt.f32.s32.to.zero.pseudo %v754
        %v771 = vcvt.f32.s32.to.zero.pseudo %v755
        %v772 = vcvt.f32.s32.to.zero.pseudo %v756
        %v773 = vcvt.f32.s32.to.zero.pseudo %v757
        %v774 = vcvt.f32.s32.to.zero.pseudo %v758
        %v775 = vcvt.f32.s32.to.zero.pseudo %v759
        %v776 = vsub.s32 %v760, 1
        %v777 = vsub.s32 %v761, 1
        %v778 = vsub.s32 %v762, 1
        %v779 = vsub.s32 %v763, 1
        %v780 = vsub.s32 %v764, 1
        %v781 = vsub.s32 %v765, 1
        %v782 = vsub.s32 %v766, 1
        %v783 = vsub.s32 %v767, 1
        %v784 = vsub.s32 %v768, 1
        %v785 = vsub.s32 %v769, 1
        %v786 = vsub.s32 %v770, 1
        %v787 = vsub.s32 %v771, 1
        %v788 = vsub.s32 %v772, 1
        %v789 = vsub.s32 %v773, 1
        %v790 = vsub.s32 %v774, 1
        %v791 = vsub.s32 %v775, 1
        %vm792 = vcmp.gt.s32.totalorder %v776, 0
        %v793 = vsel %vm792, %v776, 0
        %vm794 = vcmp.gt.s32.totalorder %v777, 0
        %v795 = vsel %vm794, %v777, 0
        %vm796 = vcmp.gt.s32.totalorder %v778, 0
        %v797 = vsel %vm796, %v778, 0
        %vm798 = vcmp.gt.s32.totalorder %v779, 0
        %v799 = vsel %vm798, %v779, 0
        %vm800 = vcmp.gt.s32.totalorder %v780, 0
        %v801 = vsel %vm800, %v780, 0
        %vm802 = vcmp.gt.s32.totalorder %v781, 0
        %v803 = vsel %vm802, %v781, 0
        %vm804 = vcmp.gt.s32.totalorder %v782, 0
        %v805 = vsel %vm804, %v782, 0
        %vm806 = vcmp.gt.s32.totalorder %v783, 0
        %v807 = vsel %vm806, %v783, 0
        %vm808 = vcmp.gt.s32.totalorder %v784, 0
        %v809 = vsel %vm808, %v784, 0
        %vm810 = vcmp.gt.s32.totalorder %v785, 0
        %v811 = vsel %vm810, %v785, 0
        %vm812 = vcmp.gt.s32.totalorder %v786, 0
        %v813 = vsel %vm812, %v786, 0
        %vm814 = vcmp.gt.s32.totalorder %v787, 0
        %v815 = vsel %vm814, %v787, 0
        %vm816 = vcmp.gt.s32.totalorder %v788, 0
        %v817 = vsel %vm816, %v788, 0
        %vm818 = vcmp.gt.s32.totalorder %v789, 0
        %v819 = vsel %vm818, %v789, 0
        %vm820 = vcmp.gt.s32.totalorder %v790, 0
        %v821 = vsel %vm820, %v790, 0
        %vm822 = vcmp.gt.s32.totalorder %v791, 0
        %v823 = vsel %vm822, %v791, 0
        %vm824 = vcmp.lt.s32.totalorder %v793, 14
        %v825 = vsel %vm824, %v793, 14
        %vm826 = vcmp.lt.s32.totalorder %v795, 14
        %v827 = vsel %vm826, %v795, 14
        %vm828 = vcmp.lt.s32.totalorder %v797, 14
        %v829 = vsel %vm828, %v797, 14
        %vm830 = vcmp.lt.s32.totalorder %v799, 14
        %v831 = vsel %vm830, %v799, 14
        %vm832 = vcmp.lt.s32.totalorder %v801, 14
        %v833 = vsel %vm832, %v801, 14
        %vm834 = vcmp.lt.s32.totalorder %v803, 14
        %v835 = vsel %vm834, %v803, 14
        %vm836 = vcmp.lt.s32.totalorder %v805, 14
        %v837 = vsel %vm836, %v805, 14
        %vm838 = vcmp.lt.s32.totalorder %v807, 14
        %v839 = vsel %vm838, %v807, 14
        %vm840 = vcmp.lt.s32.totalorder %v809, 14
        %v841 = vsel %vm840, %v809, 14
        %vm842 = vcmp.lt.s32.totalorder %v811, 14
        %v843 = vsel %vm842, %v811, 14
        %vm844 = vcmp.lt.s32.totalorder %v813, 14
        %v845 = vsel %vm844, %v813, 14
        %vm846 = vcmp.lt.s32.totalorder %v815, 14
        %v847 = vsel %vm846, %v815, 14
        %vm848 = vcmp.lt.s32.totalorder %v817, 14
        %v849 = vsel %vm848, %v817, 14
        %vm850 = vcmp.lt.s32.totalorder %v819, 14
        %v851 = vsel %vm850, %v819, 14
        %vm852 = vcmp.lt.s32.totalorder %v821, 14
        %v853 = vsel %vm852, %v821, 14
        %vm854 = vcmp.lt.s32.totalorder %v823, 14
        %v855 = vsel %vm854, %v823, 14
        %v856 = vlaneseq
        %v857 = vshrl.u32 %v856, 7
        %v858 = vadd.s32 %v857, 8
        %v859 = vadd.s32 %v857, 16
        %v860 = vadd.s32 %v857, 24
        %v861 = vadd.s32 %v857, 32
        %v862 = vadd.s32 %v857, 40
        %v863 = vadd.s32 %v857, 48
        %v864 = vadd.s32 %v857, 56
        %v865 = vadd.s32 %v857, 64
        %v866 = vadd.s32 %v857, 72
        %v867 = vadd.s32 %v857, 80
        %v868 = vadd.s32 %v857, 88
        %v869 = vadd.s32 %v857, 96
        %v870 = vadd.s32 %v857, 104
        %v871 = vadd.s32 %v857, 112
        %v872 = vadd.s32 %v857, 120
        %s873 = sadd.s32 %s20, %s21
        %s874 = smul.u32 %s873, 128
        %v875 = vstv %s874
        %v876 = vadd.s32 %v875, %v857
        %v877 = vadd.s32 %v875, %v858
        %v878 = vadd.s32 %v875, %v859
        %v879 = vadd.s32 %v875, %v860
        %v880 = vadd.s32 %v875, %v861
        %v881 = vadd.s32 %v875, %v862
        %v882 = vadd.s32 %v875, %v863
        %v883 = vadd.s32 %v875, %v864
        %v884 = vadd.s32 %v875, %v865
        %v885 = vadd.s32 %v875, %v866
        %v886 = vadd.s32 %v875, %v867
        %v887 = vadd.s32 %v875, %v868
        %v888 = vadd.s32 %v875, %v869
        %v889 = vadd.s32 %v875, %v870
        %v890 = vadd.s32 %v875, %v871
        %v891 = vadd.s32 %v875, %v872
        %vm892 = vcmp.lt.s32.totalorder %v876, 128
        %vm893 = vcmp.lt.s32.totalorder %v877, 128
        %vm894 = vcmp.lt.s32.totalorder %v878, 128
        %vm895 = vcmp.lt.s32.totalorder %v879, 128
        %vm896 = vcmp.lt.s32.totalorder %v880, 128
        %vm897 = vcmp.lt.s32.totalorder %v881, 128
        %vm898 = vcmp.lt.s32.totalorder %v882, 128
        %vm899 = vcmp.lt.s32.totalorder %v883, 128
        %vm900 = vcmp.lt.s32.totalorder %v884, 128
        %vm901 = vcmp.lt.s32.totalorder %v885, 128
        %vm902 = vcmp.lt.s32.totalorder %v886, 128
        %vm903 = vcmp.lt.s32.totalorder %v887, 128
        %vm904 = vcmp.lt.s32.totalorder %v888, 128
        %vm905 = vcmp.lt.s32.totalorder %v889, 128
        %vm906 = vcmp.lt.s32.totalorder %v890, 128
        %vm907 = vcmp.lt.s32.totalorder %v891, 128
        %v908 = vsel %vm892, %v825, 4294967295
        %v909 = vsel %vm893, %v827, 4294967295
        %v910 = vsel %vm894, %v829, 4294967295
        %v911 = vsel %vm895, %v831, 4294967295
        %v912 = vsel %vm896, %v833, 4294967295
        %v913 = vsel %vm897, %v835, 4294967295
        %v914 = vsel %vm898, %v837, 4294967295
        %v915 = vsel %vm899, %v839, 4294967295
        %v916 = vsel %vm900, %v841, 4294967295
        %v917 = vsel %vm901, %v843, 4294967295
        %v918 = vsel %vm902, %v845, 4294967295
        %v919 = vsel %vm903, %v847, 4294967295
        %v920 = vsel %vm904, %v849, 4294967295
        %v921 = vsel %vm905, %v851, 4294967295
        %v922 = vsel %vm906, %v853, 4294967295
        %v923 = vsel %vm907, %v855, 4294967295
        %vm924 = vcmp.eq.s32.totalorder %v407, %v908
        %vm925 = vcmp.eq.s32.totalorder %v407, %v909
        %vm926 = vcmp.eq.s32.totalorder %v407, %v910
        %vm927 = vcmp.eq.s32.totalorder %v407, %v911
        %vm928 = vcmp.eq.s32.totalorder %v407, %v912
        %vm929 = vcmp.eq.s32.totalorder %v407, %v913
        %vm930 = vcmp.eq.s32.totalorder %v407, %v914
        %vm931 = vcmp.eq.s32.totalorder %v407, %v915
        %vm932 = vcmp.eq.s32.totalorder %v407, %v916
        %vm933 = vcmp.eq.s32.totalorder %v407, %v917
        %vm934 = vcmp.eq.s32.totalorder %v407, %v918
        %vm935 = vcmp.eq.s32.totalorder %v407, %v919
        %vm936 = vcmp.eq.s32.totalorder %v407, %v920
        %vm937 = vcmp.eq.s32.totalorder %v407, %v921
        %vm938 = vcmp.eq.s32.totalorder %v407, %v922
        %vm939 = vcmp.eq.s32.totalorder %v407, %v923
        %v940 = vsel %vm924, 1, 0
        %v941 = vsel %vm925, 1, 0
        %v942 = vsel %vm926, 1, 0
        %v943 = vsel %vm927, 1, 0
        %v944 = vsel %vm928, 1, 0
        %v945 = vsel %vm929, 1, 0
        %v946 = vsel %vm930, 1, 0
        %v947 = vsel %vm931, 1, 0
        %v948 = vsel %vm932, 1, 0
        %v949 = vsel %vm933, 1, 0
        %v950 = vsel %vm934, 1, 0
        %v951 = vsel %vm935, 1, 0
        %v952 = vsel %vm936, 1, 0
        %v953 = vsel %vm937, 1, 0
        %v954 = vsel %vm938, 1, 0
        %v955 = vsel %vm939, 1, 0
        %v956 = vcvt.s32.f32 %v940
        %v957 = vcvt.s32.f32 %v941
        %v958 = vcvt.s32.f32 %v942
        %v959 = vcvt.s32.f32 %v943
        %v960 = vcvt.s32.f32 %v944
        %v961 = vcvt.s32.f32 %v945
        %v962 = vcvt.s32.f32 %v946
        %v963 = vcvt.s32.f32 %v947
        %v964 = vcvt.s32.f32 %v948
        %v965 = vcvt.s32.f32 %v949
        %v966 = vcvt.s32.f32 %v950
        %v967 = vcvt.s32.f32 %v951
        %v968 = vcvt.s32.f32 %v952
        %v969 = vcvt.s32.f32 %v953
        %v970 = vcvt.s32.f32 %v954
        %v971 = vcvt.s32.f32 %v955
        %vm972 = vcmp.eq.s32.totalorder %v407, 0
        %vm973 = vcmp.eq.s32.totalorder %v407, 1
        %vm974 = vcmp.eq.s32.totalorder %v407, 2
        %976 = vset.pattern.permute.xlu0 0
        %977 = vperm.xlu0 %976, %v712
        %v978 = vpop.permute.xlu0 %977
        %981 = vset.pattern.permute.xlu0 0
        %982 = vperm.xlu0 %981, %v713
        %v983 = vpop.permute.xlu0 %982
        %986 = vset.pattern.permute.xlu0 0
        %987 = vperm.xlu0 %986, %v714
        %v988 = vpop.permute.xlu0 %987
        %991 = vset.pattern.permute.xlu0 0
        %992 = vperm.xlu0 %991, %v715
        %v993 = vpop.permute.xlu0 %992
        %996 = vset.pattern.permute.xlu0 0
        %997 = vperm.xlu0 %996, %v716
        %v998 = vpop.permute.xlu0 %997
        %1001 = vset.pattern.permute.xlu0 0
        %1002 = vperm.xlu0 %1001, %v717
        %v1003 = vpop.permute.xlu0 %1002
        %1006 = vset.pattern.permute.xlu0 0
        %1007 = vperm.xlu0 %1006, %v718
        %v1008 = vpop.permute.xlu0 %1007
        %1011 = vset.pattern.permute.xlu0 0
        %1012 = vperm.xlu0 %1011, %v719
        %v1013 = vpop.permute.xlu0 %1012
        %1016 = vset.pattern.permute.xlu0 0
        %1017 = vperm.xlu0 %1016, %v720
        %v1018 = vpop.permute.xlu0 %1017
        %1021 = vset.pattern.permute.xlu0 0
        %1022 = vperm.xlu0 %1021, %v721
        %v1023 = vpop.permute.xlu0 %1022
        %1026 = vset.pattern.permute.xlu0 0
        %1027 = vperm.xlu0 %1026, %v722
        %v1028 = vpop.permute.xlu0 %1027
        %1031 = vset.pattern.permute.xlu0 0
        %1032 = vperm.xlu0 %1031, %v723
        %v1033 = vpop.permute.xlu0 %1032
        %1036 = vset.pattern.permute.xlu0 0
        %1037 = vperm.xlu0 %1036, %v724
        %v1038 = vpop.permute.xlu0 %1037
        %1041 = vset.pattern.permute.xlu0 0
        %1042 = vperm.xlu0 %1041, %v725
        %v1043 = vpop.permute.xlu0 %1042
        %1046 = vset.pattern.permute.xlu0 0
        %1047 = vperm.xlu0 %1046, %v726
        %v1048 = vpop.permute.xlu0 %1047
        %1051 = vset.pattern.permute.xlu0 0
        %1052 = vperm.xlu0 %1051, %v727
        %v1053 = vpop.permute.xlu0 %1052
        %v1055 = vsel %vm974, %v978, 0.0
        %v1056 = vsel %vm974, %v983, 0.0
        %v1057 = vsel %vm974, %v988, 0.0
        %v1058 = vsel %vm974, %v993, 0.0
        %v1059 = vsel %vm974, %v998, 0.0
        %v1060 = vsel %vm974, %v1003, 0.0
        %v1061 = vsel %vm974, %v1008, 0.0
        %v1062 = vsel %vm974, %v1013, 0.0
        %v1063 = vsel %vm974, %v1018, 0.0
        %v1064 = vsel %vm974, %v1023, 0.0
        %v1065 = vsel %vm974, %v1028, 0.0
        %v1066 = vsel %vm974, %v1033, 0.0
        %v1067 = vsel %vm974, %v1038, 0.0
        %v1068 = vsel %vm974, %v1043, 0.0
        %v1069 = vsel %vm974, %v1048, 0.0
        %v1070 = vsel %vm974, %v1053, 0.0
        %v1071 = vsel %vm973, %v375, %v1055
        %v1072 = vsel %vm973, %v377, %v1056
        %v1073 = vsel %vm973, %v379, %v1057
        %v1074 = vsel %vm973, %v381, %v1058
        %v1075 = vsel %vm973, %v383, %v1059
        %v1076 = vsel %vm973, %v385, %v1060
        %v1077 = vsel %vm973, %v387, %v1061
        %v1078 = vsel %vm973, %v389, %v1062
        %v1079 = vsel %vm973, %v391, %v1063
        %v1080 = vsel %vm973, %v393, %v1064
        %v1081 = vsel %vm973, %v395, %v1065
        %v1082 = vsel %vm973, %v397, %v1066
        %v1083 = vsel %vm973, %v399, %v1067
        %v1084 = vsel %vm973, %v401, %v1068
        %v1085 = vsel %vm973, %v403, %v1069
        %v1086 = vsel %vm973, %v405, %v1070
        %v1087 = vsel %vm972, 1.0, %v1071
        %v1088 = vsel %vm972, 1.0, %v1072
        %v1089 = vsel %vm972, 1.0, %v1073
        %v1090 = vsel %vm972, 1.0, %v1074
        %v1091 = vsel %vm972, 1.0, %v1075
        %v1092 = vsel %vm972, 1.0, %v1076
        %v1093 = vsel %vm972, 1.0, %v1077
        %v1094 = vsel %vm972, 1.0, %v1078
        %v1095 = vsel %vm972, 1.0, %v1079
        %v1096 = vsel %vm972, 1.0, %v1080
        %v1097 = vsel %vm972, 1.0, %v1081
        %v1098 = vsel %vm972, 1.0, %v1082
        %v1099 = vsel %vm972, 1.0, %v1083
        %v1100 = vsel %vm972, 1.0, %v1084
        %v1101 = vsel %vm972, 1.0, %v1085
        %v1102 = vsel %vm972, 1.0, %v1086
        %1103 = vxpose.xlu0.b32.start [1/16] %v1087, 128
        %1104 = vxpose.xlu0.b32.cont [2/16] %v1088, 128
        %1105 = vxpose.xlu0.b32.cont [3/16] %v1089, 128
        %1106 = vxpose.xlu0.b32.cont [4/16] %v1090, 128
        %1107 = vxpose.xlu0.b32.cont [5/16] %v1091, 128
        %1108 = vxpose.xlu0.b32.cont [6/16] %v1092, 128
        %1109 = vxpose.xlu0.b32.cont [7/16] %v1093, 128
        %1110 = vxpose.xlu0.b32.cont [8/16] %v1094, 128
        %1111 = vxpose.xlu0.b32.cont [9/16] %v1095, 128
        %1112 = vxpose.xlu0.b32.cont [10/16] %v1096, 128
        %1113 = vxpose.xlu0.b32.cont [11/16] %v1097, 128
        %1114 = vxpose.xlu0.b32.cont [12/16] %v1098, 128
        %1115 = vxpose.xlu0.b32.cont [13/16] %v1099, 128
        %1116 = vxpose.xlu0.b32.cont [14/16] %v1100, 128
        %1117 = vxpose.xlu0.b32.cont [15/16] %v1101, 128
        %1118 = vxpose.xlu0.b32.end [16/16] %v1102, 128
        %v1119 = vpop.trf.xlu0
        %v1120 = vpop.trf.xlu0
        %v1121 = vpop.trf.xlu0
        %v1122 = vpop.trf.xlu0
        %v1123 = vpop.trf.xlu0
        %v1124 = vpop.trf.xlu0
        %v1125 = vpop.trf.xlu0
        %v1126 = vpop.trf.xlu0
        %v1127 = vpop.trf.xlu0
        %v1128 = vpop.trf.xlu0
        %v1129 = vpop.trf.xlu0
        %v1130 = vpop.trf.xlu0
        %v1131 = vpop.trf.xlu0
        %v1132 = vpop.trf.xlu0
        %v1133 = vpop.trf.xlu0
        %v1134 = vpop.trf.xlu0
        %1135 = vmatprep.subr.mxu0 0.0
        %v1136 = vand.u32 %v956, 4294901760
        %1137 = vmatpush1.msra.mxu0 %v1136
        %1138 = vmatprep.subr.mxu0 0.0
        %v1139 = vand.u32 %v957, 4294901760
        %1140 = vmatpush1.msra.mxu0 %v1139
        %1141 = vmatprep.subr.mxu0 0.0
        %v1142 = vand.u32 %v958, 4294901760
        %1143 = vmatpush1.msra.mxu0 %v1142
        %1144 = vmatprep.subr.mxu0 0.0
        %v1145 = vand.u32 %v959, 4294901760
        %1146 = vmatpush1.msra.mxu0 %v1145
        %1147 = vmatprep.subr.mxu0 0.0
        %v1148 = vand.u32 %v960, 4294901760
        %1149 = vmatpush1.msra.mxu0 %v1148
        %1150 = vmatprep.subr.mxu0 0.0
        %v1151 = vand.u32 %v961, 4294901760
        %1152 = vmatpush1.msra.mxu0 %v1151
        %1153 = vmatprep.subr.mxu0 0.0
        %v1154 = vand.u32 %v962, 4294901760
        %1155 = vmatpush1.msra.mxu0 %v1154
        %1156 = vmatprep.subr.mxu0 0.0
        %v1157 = vand.u32 %v963, 4294901760
        %1158 = vmatpush1.msra.mxu0 %v1157
        %1159 = vmatprep.subr.mxu0 0.0
        %v1160 = vand.u32 %v964, 4294901760
        %1161 = vmatpush1.msra.mxu0 %v1160
        %1162 = vmatprep.subr.mxu0 0.0
        %v1163 = vand.u32 %v965, 4294901760
        %1164 = vmatpush1.msra.mxu0 %v1163
        %1165 = vmatprep.subr.mxu0 0.0
        %v1166 = vand.u32 %v966, 4294901760
        %1167 = vmatpush1.msra.mxu0 %v1166
        %1168 = vmatprep.subr.mxu0 0.0
        %v1169 = vand.u32 %v967, 4294901760
        %1170 = vmatpush1.msra.mxu0 %v1169
        %1171 = vmatprep.subr.mxu0 0.0
        %v1172 = vand.u32 %v968, 4294901760
        %1173 = vmatpush1.msra.mxu0 %v1172
        %1174 = vmatprep.subr.mxu0 0.0
        %v1175 = vand.u32 %v969, 4294901760
        %1176 = vmatpush1.msra.mxu0 %v1175
        %1177 = vmatprep.subr.mxu0 0.0
        %v1178 = vand.u32 %v970, 4294901760
        %1179 = vmatpush1.msra.mxu0 %v1178
        %1180 = vmatprep.subr.mxu0 0.0
        %v1181 = vand.u32 %v971, 4294901760
        %1182 = vmatpush1.msra.mxu0 %v1181
        %1183 = vmatprep.subr.mxu0 0.0
        %1184 = vmatpush1.msra.mxu0 0.0
        %1185 = vmatprep.subr.mxu0 0.0
        %1186 = vmatpush1.msra.mxu0 0.0
        %1187 = vmatprep.subr.mxu0 0.0
        %1188 = vmatpush1.msra.mxu0 0.0
        %1189 = vmatprep.subr.mxu0 0.0
        %1190 = vmatpush1.msra.mxu0 0.0
        %1191 = vmatprep.subr.mxu0 0.0
        %1192 = vmatpush1.msra.mxu0 0.0
        %1193 = vmatprep.subr.mxu0 0.0
        %1194 = vmatpush1.msra.mxu0 0.0
        %1195 = vmatprep.subr.mxu0 0.0
        %1196 = vmatpush1.msra.mxu0 0.0
        %1197 = vmatprep.subr.mxu0 0.0
        %1198 = vmatpush1.msra.mxu0 0.0
        %1199 = vmatprep.subr.mxu0 0.0
        %1200 = vmatpush1.msra.mxu0 0.0
        %1201 = vmatprep.subr.mxu0 0.0
        %1202 = vmatpush1.msra.mxu0 0.0
        %1203 = vmatprep.subr.mxu0 0.0
        %1204 = vmatpush1.msra.mxu0 0.0
        %1205 = vmatprep.subr.mxu0 0.0
        %1206 = vmatpush1.msra.mxu0 0.0
        %1207 = vmatprep.subr.mxu0 0.0
        %1208 = vmatpush1.msra.mxu0 0.0
        %1209 = vmatprep.subr.mxu0 0.0
        %1210 = vmatpush1.msra.mxu0 0.0
        %1211 = vmatprep.subr.mxu0 0.0
        %1212 = vmatpush1.msra.mxu0 0.0
        %1213 = vmatprep.subr.mxu0 0.0
        %1214 = vmatpush1.msra.mxu0 0.0
        %1215 = vmatprep.mubr.f32.mxu0 0.0
        %v1216 = vand.u32 %v1119, 4294901760
        %v1217 = vsub.f32 %v1119, %v1216
        %v1218 = vand.u32 %v1217, 4294901760
        %v1219 = vsub.f32 %v1217, %v1218
        %v1220 = vand.u32 %v1219, 4294901760
        %1221 = vmatmul.mubr.f32.gmra.mrb[0].mxu0 %v1220
        %v1222 = vpop.f32.mrb[0].mxu0
        %v1223 = vadd.f32 0.0, %v1222
        %v1224 = vpop.f32.mrb[0].mxu0
        %1225 = vmatprep.mubr.f32.mxu0 0.0
        %v1226 = vand.u32 %v1120, 4294901760
        %v1227 = vsub.f32 %v1120, %v1226
        %v1228 = vand.u32 %v1227, 4294901760
        %v1229 = vsub.f32 %v1227, %v1228
        %v1230 = vand.u32 %v1229, 4294901760
        %1231 = vmatmul.mubr.f32.gmra.mrb[0].mxu0 %v1230
        %v1232 = vpop.f32.mrb[0].mxu0
        %v1233 = vpop.f32.mrb[0].mxu0
        %1234 = vmatprep.mubr.f32.mxu0 0.0
        %v1235 = vand.u32 %v1121, 4294901760
        %v1236 = vsub.f32 %v1121, %v1235
        %v1237 = vand.u32 %v1236, 4294901760
        %v1238 = vsub.f32 %v1236, %v1237
        %v1239 = vand.u32 %v1238, 4294901760
        %1240 = vmatmul.mubr.f32.gmra.mrb[0].mxu0 %v1239
        %v1241 = vpop.f32.mrb[0].mxu0
        %v1242 = vpop.f32.mrb[0].mxu0
        %1243 = vmatprep.mubr.f32.mxu0 0.0
        %v1244 = vand.u32 %v1122, 4294901760
        %v1245 = vsub.f32 %v1122, %v1244
        %v1246 = vand.u32 %v1245, 4294901760
        %v1247 = vsub.f32 %v1245, %v1246
        %v1248 = vand.u32 %v1247, 4294901760
        %1249 = vmatmul.mubr.f32.gmra.mrb[0].mxu0 %v1248
        %v1250 = vpop.f32.mrb[0].mxu0
        %v1251 = vpop.f32.mrb[0].mxu0
        %1252 = vmatprep.mubr.f32.mxu0 0.0
        %v1253 = vand.u32 %v1123, 4294901760
        %v1254 = vsub.f32 %v1123, %v1253
        %v1255 = vand.u32 %v1254, 4294901760
        %v1256 = vsub.f32 %v1254, %v1255
        %v1257 = vand.u32 %v1256, 4294901760
        %1258 = vmatmul.mubr.f32.gmra.mrb[0].mxu0 %v1257
        %v1259 = vpop.f32.mrb[0].mxu0
        %v1260 = vpop.f32.mrb[0].mxu0
        %1261 = vmatprep.mubr.f32.mxu0 0.0
        %v1262 = vand.u32 %v1124, 4294901760
        %v1263 = vsub.f32 %v1124, %v1262
        %v1264 = vand.u32 %v1263, 4294901760
        %v1265 = vsub.f32 %v1263, %v1264
        %v1266 = vand.u32 %v1265, 4294901760
        %1267 = vmatmul.mubr.f32.gmra.mrb[0].mxu0 %v1266
        %v1268 = vpop.f32.mrb[0].mxu0
        %v1269 = vpop.f32.mrb[0].mxu0
        %1270 = vmatprep.mubr.f32.mxu0 0.0
        %v1271 = vand.u32 %v1125, 4294901760
        %v1272 = vsub.f32 %v1125, %v1271
        %v1273 = vand.u32 %v1272, 4294901760
        %v1274 = vsub.f32 %v1272, %v1273
        %v1275 = vand.u32 %v1274, 4294901760
        %1276 = vmatmul.mubr.f32.gmra.mrb[0].mxu0 %v1275
        %v1277 = vpop.f32.mrb[0].mxu0
        %v1278 = vpop.f32.mrb[0].mxu0
        %1279 = vmatprep.mubr.f32.mxu0 0.0
        %v1280 = vand.u32 %v1126, 4294901760
        %v1281 = vsub.f32 %v1126, %v1280
        %v1282 = vand.u32 %v1281, 4294901760
        %v1283 = vsub.f32 %v1281, %v1282
        %v1284 = vand.u32 %v1283, 4294901760
        %1285 = vmatmul.mubr.f32.gmra.mrb[0].mxu0 %v1284
        %v1286 = vpop.f32.mrb[0].mxu0
        %v1287 = vpop.f32.mrb[0].mxu0
        %1288 = vmatprep.mubr.f32.mxu0 0.0
        %v1289 = vand.u32 %v1127, 4294901760
        %v1290 = vsub.f32 %v1127, %v1289
        %v1291 = vand.u32 %v1290, 4294901760
        %v1292 = vsub.f32 %v1290, %v1291
        %v1293 = vand.u32 %v1292, 4294901760
        %1294 = vmatmul.mubr.f32.gmra.mrb[0].mxu0 %v1293
        %v1295 = vpop.f32.mrb[0].mxu0
        %v1296 = vpop.f32.mrb[0].mxu0
        %1297 = vmatprep.mubr.f32.mxu0 0.0
        %v1298 = vand.u32 %v1128, 4294901760
        %v1299 = vsub.f32 %v1128, %v1298
        %v1300 = vand.u32 %v1299, 4294901760
        %v1301 = vsub.f32 %v1299, %v1300
        %v1302 = vand.u32 %v1301, 4294901760
        %1303 = vmatmul.mubr.f32.gmra.mrb[0].mxu0 %v1302
        %v1304 = vpop.f32.mrb[0].mxu0
        %v1305 = vpop.f32.mrb[0].mxu0
        %1306 = vmatprep.mubr.f32.mxu0 0.0
        %v1307 = vand.u32 %v1129, 4294901760
        %v1308 = vsub.f32 %v1129, %v1307
        %v1309 = vand.u32 %v1308, 4294901760
        %v1310 = vsub.f32 %v1308, %v1309
        %v1311 = vand.u32 %v1310, 4294901760
        %1312 = vmatmul.mubr.f32.gmra.mrb[0].mxu0 %v1311
        %v1313 = vpop.f32.mrb[0].mxu0
        %v1314 = vpop.f32.mrb[0].mxu0
        %1315 = vmatprep.mubr.f32.mxu0 0.0
        %v1316 = vand.u32 %v1130, 4294901760
        %v1317 = vsub.f32 %v1130, %v1316
        %v1318 = vand.u32 %v1317, 4294901760
        %v1319 = vsub.f32 %v1317, %v1318
        %v1320 = vand.u32 %v1319, 4294901760
        %1321 = vmatmul.mubr.f32.gmra.mrb[0].mxu0 %v1320
        %v1322 = vpop.f32.mrb[0].mxu0
        %v1323 = vpop.f32.mrb[0].mxu0
        %1324 = vmatprep.mubr.f32.mxu0 0.0
        %v1325 = vand.u32 %v1131, 4294901760
        %v1326 = vsub.f32 %v1131, %v1325
        %v1327 = vand.u32 %v1326, 4294901760
        %v1328 = vsub.f32 %v1326, %v1327
        %v1329 = vand.u32 %v1328, 4294901760
        %1330 = vmatmul.mubr.f32.gmra.mrb[0].mxu0 %v1329
        %v1331 = vpop.f32.mrb[0].mxu0
        %v1332 = vpop.f32.mrb[0].mxu0
        %1333 = vmatprep.mubr.f32.mxu0 0.0
        %v1334 = vand.u32 %v1132, 4294901760
        %v1335 = vsub.f32 %v1132, %v1334
        %v1336 = vand.u32 %v1335, 4294901760
        %v1337 = vsub.f32 %v1335, %v1336
        %v1338 = vand.u32 %v1337, 4294901760
        %1339 = vmatmul.mubr.f32.gmra.mrb[0].mxu0 %v1338
        %v1340 = vpop.f32.mrb[0].mxu0
        %v1341 = vpop.f32.mrb[0].mxu0
        %1342 = vmatprep.mubr.f32.mxu0 0.0
        %v1343 = vand.u32 %v1133, 4294901760
        %v1344 = vsub.f32 %v1133, %v1343
        %v1345 = vand.u32 %v1344, 4294901760
        %v1346 = vsub.f32 %v1344, %v1345
        %v1347 = vand.u32 %v1346, 4294901760
        %1348 = vmatmul.mubr.f32.gmra.mrb[0].mxu0 %v1347
        %v1349 = vpop.f32.mrb[0].mxu0
        %v1350 = vpop.f32.mrb[0].mxu0
        %1351 = vmatprep.mubr.f32.mxu0 0.0
        %v1352 = vand.u32 %v1134, 4294901760
        %v1353 = vsub.f32 %v1134, %v1352
        %v1354 = vand.u32 %v1353, 4294901760
        %v1355 = vsub.f32 %v1353, %v1354
        %v1356 = vand.u32 %v1355, 4294901760
        %1357 = vmatmul.mubr.f32.gmra.mrb[0].mxu0 %v1356
        %v1358 = vpop.f32.mrb[0].mxu0
        %v1359 = vpop.f32.mrb[0].mxu0
        %1360 = vdwg.mxu0
        %1361 = vmatprep.subr.mxu0 0.0
        %v1362 = vand.u32 %v956, 4294901760
        %v1363 = vsub.f32 %v956, %v1362
        %v1364 = vand.u32 %v1363, 4294901760
        %v1365 = vsub.f32 %v1363, %v1364
        %v1366 = vand.u32 %v1365, 4294901760
        %1367 = vmatpush1.msra.mxu0 %v1366
        %1368 = vmatprep.subr.mxu0 0.0
        %v1369 = vand.u32 %v957, 4294901760
        %v1370 = vsub.f32 %v957, %v1369
        %v1371 = vand.u32 %v1370, 4294901760
        %v1372 = vsub.f32 %v1370, %v1371
        %v1373 = vand.u32 %v1372, 4294901760
        %1374 = vmatpush1.msra.mxu0 %v1373
        %1375 = vmatprep.subr.mxu0 0.0
        %v1376 = vand.u32 %v958, 4294901760
        %v1377 = vsub.f32 %v958, %v1376
        %v1378 = vand.u32 %v1377, 4294901760
        %v1379 = vsub.f32 %v1377, %v1378
        %v1380 = vand.u32 %v1379, 4294901760
        %1381 = vmatpush1.msra.mxu0 %v1380
        %1382 = vmatprep.subr.mxu0 0.0
        %v1383 = vand.u32 %v959, 4294901760
        %v1384 = vsub.f32 %v959, %v1383
        %v1385 = vand.u32 %v1384, 4294901760
        %v1386 = vsub.f32 %v1384, %v1385
        %v1387 = vand.u32 %v1386, 4294901760
        %1388 = vmatpush1.msra.mxu0 %v1387
        %1389 = vmatprep.subr.mxu0 0.0
        %v1390 = vand.u32 %v960, 4294901760
        %v1391 = vsub.f32 %v960, %v1390
        %v1392 = vand.u32 %v1391, 4294901760
        %v1393 = vsub.f32 %v1391, %v1392
        %v1394 = vand.u32 %v1393, 4294901760
        %1395 = vmatpush1.msra.mxu0 %v1394
        %1396 = vmatprep.subr.mxu0 0.0
        %v1397 = vand.u32 %v961, 4294901760
        %v1398 = vsub.f32 %v961, %v1397
        %v1399 = vand.u32 %v1398, 4294901760
        %v1400 = vsub.f32 %v1398, %v1399
        %v1401 = vand.u32 %v1400, 4294901760
        %1402 = vmatpush1.msra.mxu0 %v1401
        %1403 = vmatprep.subr.mxu0 0.0
        %v1404 = vand.u32 %v962, 4294901760
        %v1405 = vsub.f32 %v962, %v1404
        %v1406 = vand.u32 %v1405, 4294901760
        %v1407 = vsub.f32 %v1405, %v1406
        %v1408 = vand.u32 %v1407, 4294901760
        %1409 = vmatpush1.msra.mxu0 %v1408
        %1410 = vmatprep.subr.mxu0 0.0
        %v1411 = vand.u32 %v963, 4294901760
        %v1412 = vsub.f32 %v963, %v1411
        %v1413 = vand.u32 %v1412, 4294901760
        %v1414 = vsub.f32 %v1412, %v1413
        %v1415 = vand.u32 %v1414, 4294901760
        %1416 = vmatpush1.msra.mxu0 %v1415
        %1417 = vmatprep.subr.mxu0 0.0
        %v1418 = vand.u32 %v964, 4294901760
        %v1419 = vsub.f32 %v964, %v1418
        %v1420 = vand.u32 %v1419, 4294901760
        %v1421 = vsub.f32 %v1419, %v1420
        %v1422 = vand.u32 %v1421, 4294901760
        %1423 = vmatpush1.msra.mxu0 %v1422
        %1424 = vmatprep.subr.mxu0 0.0
        %v1425 = vand.u32 %v965, 4294901760
        %v1426 = vsub.f32 %v965, %v1425
        %v1427 = vand.u32 %v1426, 4294901760
        %v1428 = vsub.f32 %v1426, %v1427
        %v1429 = vand.u32 %v1428, 4294901760
        %1430 = vmatpush1.msra.mxu0 %v1429
        %1431 = vmatprep.subr.mxu0 0.0
        %v1432 = vand.u32 %v966, 4294901760
        %v1433 = vsub.f32 %v966, %v1432
        %v1434 = vand.u32 %v1433, 4294901760
        %v1435 = vsub.f32 %v1433, %v1434
        %v1436 = vand.u32 %v1435, 4294901760
        %1437 = vmatpush1.msra.mxu0 %v1436
        %1438 = vmatprep.subr.mxu0 0.0
        %v1439 = vand.u32 %v967, 4294901760
        %v1440 = vsub.f32 %v967, %v1439
        %v1441 = vand.u32 %v1440, 4294901760
        %v1442 = vsub.f32 %v1440, %v1441
        %v1443 = vand.u32 %v1442, 4294901760
        %1444 = vmatpush1.msra.mxu0 %v1443
        %1445 = vmatprep.subr.mxu0 0.0
        %v1446 = vand.u32 %v968, 4294901760
        %v1447 = vsub.f32 %v968, %v1446
        %v1448 = vand.u32 %v1447, 4294901760
        %v1449 = vsub.f32 %v1447, %v1448
        %v1450 = vand.u32 %v1449, 4294901760
        %1451 = vmatpush1.msra.mxu0 %v1450
        %1452 = vmatprep.subr.mxu0 0.0
        %v1453 = vand.u32 %v969, 4294901760
        %v1454 = vsub.f32 %v969, %v1453
        %v1455 = vand.u32 %v1454, 4294901760
        %v1456 = vsub.f32 %v1454, %v1455
        %v1457 = vand.u32 %v1456, 4294901760
        %1458 = vmatpush1.msra.mxu0 %v1457
        %1459 = vmatprep.subr.mxu0 0.0
        %v1460 = vand.u32 %v970, 4294901760
        %v1461 = vsub.f32 %v970, %v1460
        %v1462 = vand.u32 %v1461, 4294901760
        %v1463 = vsub.f32 %v1461, %v1462
        %v1464 = vand.u32 %v1463, 4294901760
        %1465 = vmatpush1.msra.mxu0 %v1464
        %1466 = vmatprep.subr.mxu0 0.0
        %v1467 = vand.u32 %v971, 4294901760
        %v1468 = vsub.f32 %v971, %v1467
        %v1469 = vand.u32 %v1468, 4294901760
        %v1470 = vsub.f32 %v1468, %v1469
        %v1471 = vand.u32 %v1470, 4294901760
        %1472 = vmatpush1.msra.mxu0 %v1471
        %1473 = vmatprep.subr.mxu0 0.0
        %1474 = vmatpush1.msra.mxu0 0.0
        %1475 = vmatprep.subr.mxu0 0.0
        %1476 = vmatpush1.msra.mxu0 0.0
        %1477 = vmatprep.subr.mxu0 0.0
        %1478 = vmatpush1.msra.mxu0 0.0
        %1479 = vmatprep.subr.mxu0 0.0
        %1480 = vmatpush1.msra.mxu0 0.0
        %1481 = vmatprep.subr.mxu0 0.0
        %1482 = vmatpush1.msra.mxu0 0.0
        %1483 = vmatprep.subr.mxu0 0.0
        %1484 = vmatpush1.msra.mxu0 0.0
        %1485 = vmatprep.subr.mxu0 0.0
        %1486 = vmatpush1.msra.mxu0 0.0
        %1487 = vmatprep.subr.mxu0 0.0
        %1488 = vmatpush1.msra.mxu0 0.0
        %1489 = vmatprep.subr.mxu0 0.0
        %1490 = vmatpush1.msra.mxu0 0.0
        %1491 = vmatprep.subr.mxu0 0.0
        %1492 = vmatpush1.msra.mxu0 0.0
        %1493 = vmatprep.subr.mxu0 0.0
        %1494 = vmatpush1.msra.mxu0 0.0
        %1495 = vmatprep.subr.mxu0 0.0
        %1496 = vmatpush1.msra.mxu0 0.0
        %1497 = vmatprep.subr.mxu0 0.0
        %1498 = vmatpush1.msra.mxu0 0.0
        %1499 = vmatprep.subr.mxu0 0.0
        %1500 = vmatpush1.msra.mxu0 0.0
        %1501 = vmatprep.subr.mxu0 0.0
        %1502 = vmatpush1.msra.mxu0 0.0
        %1503 = vmatprep.subr.mxu0 0.0
        %1504 = vmatpush1.msra.mxu0 0.0
        %1505 = vmatprep.mubr.f32.mxu0 0.0
        %v1506 = vand.u32 %v1119, 4294901760
        %1507 = vmatmul.mubr.f32.gmra.mrb[0].mxu0 %v1506
        %v1508 = vpop.f32.mrb[0].mxu0
        %v1509 = vadd.f32 %v1223, %v1508
        %v1510 = vpop.f32.mrb[0].mxu0
        %1511 = vmatprep.mubr.f32.mxu0 0.0
        %v1512 = vand.u32 %v1120, 4294901760
        %1513 = vmatmul.mubr.f32.gmra.mrb[0].mxu0 %v1512
        %v1514 = vpop.f32.mrb[0].mxu0
        %v1515 = vpop.f32.mrb[0].mxu0
        %1516 = vmatprep.mubr.f32.mxu0 0.0
        %v1517 = vand.u32 %v1121, 4294901760
        %1518 = vmatmul.mubr.f32.gmra.mrb[0].mxu0 %v1517
        %v1519 = vpop.f32.mrb[0].mxu0
        %v1520 = vpop.f32.mrb[0].mxu0
        %1521 = vmatprep.mubr.f32.mxu0 0.0
        %v1522 = vand.u32 %v1122, 4294901760
        %1523 = vmatmul.mubr.f32.gmra.mrb[0].mxu0 %v1522
        %v1524 = vpop.f32.mrb[0].mxu0
        %v1525 = vpop.f32.mrb[0].mxu0
        %1526 = vmatprep.mubr.f32.mxu0 0.0
        %v1527 = vand.u32 %v1123, 4294901760
        %1528 = vmatmul.mubr.f32.gmra.mrb[0].mxu0 %v1527
        %v1529 = vpop.f32.mrb[0].mxu0
        %v1530 = vpop.f32.mrb[0].mxu0
        %1531 = vmatprep.mubr.f32.mxu0 0.0
        %v1532 = vand.u32 %v1124, 4294901760
        %1533 = vmatmul.mubr.f32.gmra.mrb[0].mxu0 %v1532
        %v1534 = vpop.f32.mrb[0].mxu0
        %v1535 = vpop.f32.mrb[0].mxu0
        %1536 = vmatprep.mubr.f32.mxu0 0.0
        %v1537 = vand.u32 %v1125, 4294901760
        %1538 = vmatmul.mubr.f32.gmra.mrb[0].mxu0 %v1537
        %v1539 = vpop.f32.mrb[0].mxu0
        %v1540 = vpop.f32.mrb[0].mxu0
        %1541 = vmatprep.mubr.f32.mxu0 0.0
        %v1542 = vand.u32 %v1126, 4294901760
        %1543 = vmatmul.mubr.f32.gmra.mrb[0].mxu0 %v1542
        %v1544 = vpop.f32.mrb[0].mxu0
        %v1545 = vpop.f32.mrb[0].mxu0
        %1546 = vmatprep.mubr.f32.mxu0 0.0
        %v1547 = vand.u32 %v1127, 4294901760
        %1548 = vmatmul.mubr.f32.gmra.mrb[0].mxu0 %v1547
        %v1549 = vpop.f32.mrb[0].mxu0
        %v1550 = vpop.f32.mrb[0].mxu0
        %1551 = vmatprep.mubr.f32.mxu0 0.0
        %v1552 = vand.u32 %v1128, 4294901760
        %1553 = vmatmul.mubr.f32.gmra.mrb[0].mxu0 %v1552
        %v1554 = vpop.f32.mrb[0].mxu0
        %v1555 = vpop.f32.mrb[0].mxu0
        %1556 = vmatprep.mubr.f32.mxu0 0.0
        %v1557 = vand.u32 %v1129, 4294901760
        %1558 = vmatmul.mubr.f32.gmra.mrb[0].mxu0 %v1557
        %v1559 = vpop.f32.mrb[0].mxu0
        %v1560 = vpop.f32.mrb[0].mxu0
        %1561 = vmatprep.mubr.f32.mxu0 0.0
        %v1562 = vand.u32 %v1130, 4294901760
        %1563 = vmatmul.mubr.f32.gmra.mrb[0].mxu0 %v1562
        %v1564 = vpop.f32.mrb[0].mxu0
        %v1565 = vpop.f32.mrb[0].mxu0
        %1566 = vmatprep.mubr.f32.mxu0 0.0
        %v1567 = vand.u32 %v1131, 4294901760
        %1568 = vmatmul.mubr.f32.gmra.mrb[0].mxu0 %v1567
        %v1569 = vpop.f32.mrb[0].mxu0
        %v1570 = vpop.f32.mrb[0].mxu0
        %1571 = vmatprep.mubr.f32.mxu0 0.0
        %v1572 = vand.u32 %v1132, 4294901760
        %1573 = vmatmul.mubr.f32.gmra.mrb[0].mxu0 %v1572
        %v1574 = vpop.f32.mrb[0].mxu0
        %v1575 = vpop.f32.mrb[0].mxu0
        %1576 = vmatprep.mubr.f32.mxu0 0.0
        %v1577 = vand.u32 %v1133, 4294901760
        %1578 = vmatmul.mubr.f32.gmra.mrb[0].mxu0 %v1577
        %v1579 = vpop.f32.mrb[0].mxu0
        %v1580 = vpop.f32.mrb[0].mxu0
        %1581 = vmatprep.mubr.f32.mxu0 0.0
        %v1582 = vand.u32 %v1134, 4294901760
        %1583 = vmatmul.mubr.f32.gmra.mrb[0].mxu0 %v1582
        %v1584 = vpop.f32.mrb[0].mxu0
        %v1585 = vpop.f32.mrb[0].mxu0
        %1586 = vdwg.mxu0
        %1587 = vmatprep.subr.mxu0 0.0
        %v1588 = vand.u32 %v956, 4294901760
        %v1589 = vsub.f32 %v956, %v1588
        %1590 = vmatpush1.msra.mxu0 %v1589
        %1591 = vmatprep.subr.mxu0 0.0
        %v1592 = vand.u32 %v957, 4294901760
        %v1593 = vsub.f32 %v957, %v1592
        %1594 = vmatpush1.msra.mxu0 %v1593
        %1595 = vmatprep.subr.mxu0 0.0
        %v1596 = vand.u32 %v958, 4294901760
        %v1597 = vsub.f32 %v958, %v1596
        %1598 = vmatpush1.msra.mxu0 %v1597
        %1599 = vmatprep.subr.mxu0 0.0
        %v1600 = vand.u32 %v959, 4294901760
        %v1601 = vsub.f32 %v959, %v1600
        %1602 = vmatpush1.msra.mxu0 %v1601
        %1603 = vmatprep.subr.mxu0 0.0
        %v1604 = vand.u32 %v960, 4294901760
        %v1605 = vsub.f32 %v960, %v1604
        %1606 = vmatpush1.msra.mxu0 %v1605
        %1607 = vmatprep.subr.mxu0 0.0
        %v1608 = vand.u32 %v961, 4294901760
        %v1609 = vsub.f32 %v961, %v1608
        %1610 = vmatpush1.msra.mxu0 %v1609
        %1611 = vmatprep.subr.mxu0 0.0
        %v1612 = vand.u32 %v962, 4294901760
        %v1613 = vsub.f32 %v962, %v1612
        %1614 = vmatpush1.msra.mxu0 %v1613
        %1615 = vmatprep.subr.mxu0 0.0
        %v1616 = vand.u32 %v963, 4294901760
        %v1617 = vsub.f32 %v963, %v1616
        %1618 = vmatpush1.msra.mxu0 %v1617
        %1619 = vmatprep.subr.mxu0 0.0
        %v1620 = vand.u32 %v964, 4294901760
        %v1621 = vsub.f32 %v964, %v1620
        %1622 = vmatpush1.msra.mxu0 %v1621
        %1623 = vmatprep.subr.mxu0 0.0
        %v1624 = vand.u32 %v965, 4294901760
        %v1625 = vsub.f32 %v965, %v1624
        %1626 = vmatpush1.msra.mxu0 %v1625
        %1627 = vmatprep.subr.mxu0 0.0
        %v1628 = vand.u32 %v966, 4294901760
        %v1629 = vsub.f32 %v966, %v1628
        %1630 = vmatpush1.msra.mxu0 %v1629
        %1631 = vmatprep.subr.mxu0 0.0
        %v1632 = vand.u32 %v967, 4294901760
        %v1633 = vsub.f32 %v967, %v1632
        %1634 = vmatpush1.msra.mxu0 %v1633
        %1635 = vmatprep.subr.mxu0 0.0
        %v1636 = vand.u32 %v968, 4294901760
        %v1637 = vsub.f32 %v968, %v1636
        %1638 = vmatpush1.msra.mxu0 %v1637
        %1639 = vmatprep.subr.mxu0 0.0
        %v1640 = vand.u32 %v969, 4294901760
        %v1641 = vsub.f32 %v969, %v1640
        %1642 = vmatpush1.msra.mxu0 %v1641
        %1643 = vmatprep.subr.mxu0 0.0
        %v1644 = vand.u32 %v970, 4294901760
        %v1645 = vsub.f32 %v970, %v1644
        %1646 = vmatpush1.msra.mxu0 %v1645
        %1647 = vmatprep.subr.mxu0 0.0
        %v1648 = vand.u32 %v971, 4294901760
        %v1649 = vsub.f32 %v971, %v1648
        %1650 = vmatpush1.msra.mxu0 %v1649
        %1651 = vmatprep.subr.mxu0 0.0
        %1652 = vmatpush1.msra.mxu0 0.0
        %1653 = vmatprep.subr.mxu0 0.0
        %1654 = vmatpush1.msra.mxu0 0.0
        %1655 = vmatprep.subr.mxu0 0.0
        %1656 = vmatpush1.msra.mxu0 0.0
        %1657 = vmatprep.subr.mxu0 0.0
        %1658 = vmatpush1.msra.mxu0 0.0
        %1659 = vmatprep.subr.mxu0 0.0
        %1660 = vmatpush1.msra.mxu0 0.0
        %1661 = vmatprep.subr.mxu0 0.0
        %1662 = vmatpush1.msra.mxu0 0.0
        %1663 = vmatprep.subr.mxu0 0.0
        %1664 = vmatpush1.msra.mxu0 0.0
        %1665 = vmatprep.subr.mxu0 0.0
        %1666 = vmatpush1.msra.mxu0 0.0
        %1667 = vmatprep.subr.mxu0 0.0
        %1668 = vmatpush1.msra.mxu0 0.0
        %1669 = vmatprep.subr.mxu0 0.0
        %1670 = vmatpush1.msra.mxu0 0.0
        %1671 = vmatprep.subr.mxu0 0.0
        %1672 = vmatpush1.msra.mxu0 0.0
        %1673 = vmatprep.subr.mxu0 0.0
        %1674 = vmatpush1.msra.mxu0 0.0
        %1675 = vmatprep.subr.mxu0 0.0
        %1676 = vmatpush1.msra.mxu0 0.0
        %1677 = vmatprep.subr.mxu0 0.0
        %1678 = vmatpush1.msra.mxu0 0.0
        %1679 = vmatprep.subr.mxu0 0.0
        %1680 = vmatpush1.msra.mxu0 0.0
        %1681 = vmatprep.subr.mxu0 0.0
        %1682 = vmatpush1.msra.mxu0 0.0
        %1683 = vmatprep.mubr.f32.mxu0 0.0
        %v1684 = vand.u32 %v1119, 4294901760
        %v1685 = vsub.f32 %v1119, %v1684
        %1686 = vmatmul.mubr.f32.gmra.mrb[0].mxu0 %v1685
        %v1687 = vpop.f32.mrb[0].mxu0
        %v1688 = vadd.f32 %v1509, %v1687
        %v1689 = vpop.f32.mrb[0].mxu0
        %1690 = vmatprep.mubr.f32.mxu0 0.0
        %v1691 = vand.u32 %v1120, 4294901760
        %v1692 = vsub.f32 %v1120, %v1691
        %1693 = vmatmul.mubr.f32.gmra.mrb[0].mxu0 %v1692
        %v1694 = vpop.f32.mrb[0].mxu0
        %v1695 = vpop.f32.mrb[0].mxu0
        %1696 = vmatprep.mubr.f32.mxu0 0.0
        %v1697 = vand.u32 %v1121, 4294901760
        %v1698 = vsub.f32 %v1121, %v1697
        %1699 = vmatmul.mubr.f32.gmra.mrb[0].mxu0 %v1698
        %v1700 = vpop.f32.mrb[0].mxu0
        %v1701 = vpop.f32.mrb[0].mxu0
        %1702 = vmatprep.mubr.f32.mxu0 0.0
        %v1703 = vand.u32 %v1122, 4294901760
        %v1704 = vsub.f32 %v1122, %v1703
        %1705 = vmatmul.mubr.f32.gmra.mrb[0].mxu0 %v1704
        %v1706 = vpop.f32.mrb[0].mxu0
        %v1707 = vpop.f32.mrb[0].mxu0
        %1708 = vmatprep.mubr.f32.mxu0 0.0
        %v1709 = vand.u32 %v1123, 4294901760
        %v1710 = vsub.f32 %v1123, %v1709
        %1711 = vmatmul.mubr.f32.gmra.mrb[0].mxu0 %v1710
        %v1712 = vpop.f32.mrb[0].mxu0
        %v1713 = vpop.f32.mrb[0].mxu0
        %1714 = vmatprep.mubr.f32.mxu0 0.0
        %v1715 = vand.u32 %v1124, 4294901760
        %v1716 = vsub.f32 %v1124, %v1715
        %1717 = vmatmul.mubr.f32.gmra.mrb[0].mxu0 %v1716
        %v1718 = vpop.f32.mrb[0].mxu0
        %v1719 = vpop.f32.mrb[0].mxu0
        %1720 = vmatprep.mubr.f32.mxu0 0.0
        %v1721 = vand.u32 %v1125, 4294901760
        %v1722 = vsub.f32 %v1125, %v1721
        %1723 = vmatmul.mubr.f32.gmra.mrb[0].mxu0 %v1722
        %v1724 = vpop.f32.mrb[0].mxu0
        %v1725 = vpop.f32.mrb[0].mxu0
        %1726 = vmatprep.mubr.f32.mxu0 0.0
        %v1727 = vand.u32 %v1126, 4294901760
        %v1728 = vsub.f32 %v1126, %v1727
        %1729 = vmatmul.mubr.f32.gmra.mrb[0].mxu0 %v1728
        %v1730 = vpop.f32.mrb[0].mxu0
        %v1731 = vpop.f32.mrb[0].mxu0
        %1732 = vmatprep.mubr.f32.mxu0 0.0
        %v1733 = vand.u32 %v1127, 4294901760
        %v1734 = vsub.f32 %v1127, %v1733
        %1735 = vmatmul.mubr.f32.gmra.mrb[0].mxu0 %v1734
        %v1736 = vpop.f32.mrb[0].mxu0
        %v1737 = vpop.f32.mrb[0].mxu0
        %1738 = vmatprep.mubr.f32.mxu0 0.0
        %v1739 = vand.u32 %v1128, 4294901760
        %v1740 = vsub.f32 %v1128, %v1739
        %1741 = vmatmul.mubr.f32.gmra.mrb[0].mxu0 %v1740
        %v1742 = vpop.f32.mrb[0].mxu0
        %v1743 = vpop.f32.mrb[0].mxu0
        %1744 = vmatprep.mubr.f32.mxu0 0.0
        %v1745 = vand.u32 %v1129, 4294901760
        %v1746 = vsub.f32 %v1129, %v1745
        %1747 = vmatmul.mubr.f32.gmra.mrb[0].mxu0 %v1746
        %v1748 = vpop.f32.mrb[0].mxu0
        %v1749 = vpop.f32.mrb[0].mxu0
        %1750 = vmatprep.mubr.f32.mxu0 0.0
        %v1751 = vand.u32 %v1130, 4294901760
        %v1752 = vsub.f32 %v1130, %v1751
        %1753 = vmatmul.mubr.f32.gmra.mrb[0].mxu0 %v1752
        %v1754 = vpop.f32.mrb[0].mxu0
        %v1755 = vpop.f32.mrb[0].mxu0
        %1756 = vmatprep.mubr.f32.mxu0 0.0
        %v1757 = vand.u32 %v1131, 4294901760
        %v1758 = vsub.f32 %v1131, %v1757
        %1759 = vmatmul.mubr.f32.gmra.mrb[0].mxu0 %v1758
        %v1760 = vpop.f32.mrb[0].mxu0
        %v1761 = vpop.f32.mrb[0].mxu0
        %1762 = vmatprep.mubr.f32.mxu0 0.0
        %v1763 = vand.u32 %v1132, 4294901760
        %v1764 = vsub.f32 %v1132, %v1763
        %1765 = vmatmul.mubr.f32.gmra.mrb[0].mxu0 %v1764
        %v1766 = vpop.f32.mrb[0].mxu0
        %v1767 = vpop.f32.mrb[0].mxu0
        %1768 = vmatprep.mubr.f32.mxu0 0.0
        %v1769 = vand.u32 %v1133, 4294901760
        %v1770 = vsub.f32 %v1133, %v1769
        %1771 = vmatmul.mubr.f32.gmra.mrb[0].mxu0 %v1770
        %v1772 = vpop.f32.mrb[0].mxu0
        %v1773 = vpop.f32.mrb[0].mxu0
        %1774 = vmatprep.mubr.f32.mxu0 0.0
        %v1775 = vand.u32 %v1134, 4294901760
        %v1776 = vsub.f32 %v1134, %v1775
        %1777 = vmatmul.mubr.f32.gmra.mrb[0].mxu0 %v1776
        %v1778 = vpop.f32.mrb[0].mxu0
        %v1779 = vpop.f32.mrb[0].mxu0
        %1780 = vdwg.mxu0
        %1781 = vmatprep.subr.mxu0 0.0
        %v1782 = vand.u32 %v956, 4294901760
        %1783 = vmatpush1.msra.mxu0 %v1782
        %1784 = vmatprep.subr.mxu0 0.0
        %v1785 = vand.u32 %v957, 4294901760
        %1786 = vmatpush1.msra.mxu0 %v1785
        %1787 = vmatprep.subr.mxu0 0.0
        %v1788 = vand.u32 %v958, 4294901760
        %1789 = vmatpush1.msra.mxu0 %v1788
        %1790 = vmatprep.subr.mxu0 0.0
        %v1791 = vand.u32 %v959, 4294901760
        %1792 = vmatpush1.msra.mxu0 %v1791
        %1793 = vmatprep.subr.mxu0 0.0
        %v1794 = vand.u32 %v960, 4294901760
        %1795 = vmatpush1.msra.mxu0 %v1794
        %1796 = vmatprep.subr.mxu0 0.0
        %v1797 = vand.u32 %v961, 4294901760
        %1798 = vmatpush1.msra.mxu0 %v1797
        %1799 = vmatprep.subr.mxu0 0.0
        %v1800 = vand.u32 %v962, 4294901760
        %1801 = vmatpush1.msra.mxu0 %v1800
        %1802 = vmatprep.subr.mxu0 0.0
        %v1803 = vand.u32 %v963, 4294901760
        %1804 = vmatpush1.msra.mxu0 %v1803
        %1805 = vmatprep.subr.mxu0 0.0
        %v1806 = vand.u32 %v964, 4294901760
        %1807 = vmatpush1.msra.mxu0 %v1806
        %1808 = vmatprep.subr.mxu0 0.0
        %v1809 = vand.u32 %v965, 4294901760
        %1810 = vmatpush1.msra.mxu0 %v1809
        %1811 = vmatprep.subr.mxu0 0.0
        %v1812 = vand.u32 %v966, 4294901760
        %1813 = vmatpush1.msra.mxu0 %v1812
        %1814 = vmatprep.subr.mxu0 0.0
        %v1815 = vand.u32 %v967, 4294901760
        %1816 = vmatpush1.msra.mxu0 %v1815
        %1817 = vmatprep.subr.mxu0 0.0
        %v1818 = vand.u32 %v968, 4294901760
        %1819 = vmatpush1.msra.mxu0 %v1818
        %1820 = vmatprep.subr.mxu0 0.0
        %v1821 = vand.u32 %v969, 4294901760
        %1822 = vmatpush1.msra.mxu0 %v1821
        %1823 = vmatprep.subr.mxu0 0.0
        %v1824 = vand.u32 %v970, 4294901760
        %1825 = vmatpush1.msra.mxu0 %v1824
        %1826 = vmatprep.subr.mxu0 0.0
        %v1827 = vand.u32 %v971, 4294901760
        %1828 = vmatpush1.msra.mxu0 %v1827
        %1829 = vmatprep.subr.mxu0 0.0
        %1830 = vmatpush1.msra.mxu0 0.0
        %1831 = vmatprep.subr.mxu0 0.0
        %1832 = vmatpush1.msra.mxu0 0.0
        %1833 = vmatprep.subr.mxu0 0.0
        %1834 = vmatpush1.msra.mxu0 0.0
        %1835 = vmatprep.subr.mxu0 0.0
        %1836 = vmatpush1.msra.mxu0 0.0
        %1837 = vmatprep.subr.mxu0 0.0
        %1838 = vmatpush1.msra.mxu0 0.0
        %1839 = vmatprep.subr.mxu0 0.0
        %1840 = vmatpush1.msra.mxu0 0.0
        %1841 = vmatprep.subr.mxu0 0.0
        %1842 = vmatpush1.msra.mxu0 0.0
        %1843 = vmatprep.subr.mxu0 0.0
        %1844 = vmatpush1.msra.mxu0 0.0
        %1845 = vmatprep.subr.mxu0 0.0
        %1846 = vmatpush1.msra.mxu0 0.0
        %1847 = vmatprep.subr.mxu0 0.0
        %1848 = vmatpush1.msra.mxu0 0.0
        %1849 = vmatprep.subr.mxu0 0.0
        %1850 = vmatpush1.msra.mxu0 0.0
        %1851 = vmatprep.subr.mxu0 0.0
        %1852 = vmatpush1.msra.mxu0 0.0
        %1853 = vmatprep.subr.mxu0 0.0
        %1854 = vmatpush1.msra.mxu0 0.0
        %1855 = vmatprep.subr.mxu0 0.0
        %1856 = vmatpush1.msra.mxu0 0.0
        %1857 = vmatprep.subr.mxu0 0.0
        %1858 = vmatpush1.msra.mxu0 0.0
        %1859 = vmatprep.subr.mxu0 0.0
        %1860 = vmatpush1.msra.mxu0 0.0
        %1861 = vmatprep.mubr.f32.mxu0 0.0
        %v1862 = vand.u32 %v1119, 4294901760
        %v1863 = vsub.f32 %v1119, %v1862
        %v1864 = vand.u32 %v1863, 4294901760
        %1865 = vmatmul.mubr.f32.gmra.mrb[0].mxu0 %v1864
        %v1866 = vpop.f32.mrb[0].mxu0
        %v1867 = vadd.f32 %v1688, %v1866
        %v1868 = vpop.f32.mrb[0].mxu0
        %1869 = vmatprep.mubr.f32.mxu0 0.0
        %v1870 = vand.u32 %v1120, 4294901760
        %v1871 = vsub.f32 %v1120, %v1870
        %v1872 = vand.u32 %v1871, 4294901760
        %1873 = vmatmul.mubr.f32.gmra.mrb[0].mxu0 %v1872
        %v1874 = vpop.f32.mrb[0].mxu0
        %v1875 = vpop.f32.mrb[0].mxu0
        %1876 = vmatprep.mubr.f32.mxu0 0.0
        %v1877 = vand.u32 %v1121, 4294901760
        %v1878 = vsub.f32 %v1121, %v1877
        %v1879 = vand.u32 %v1878, 4294901760
        %1880 = vmatmul.mubr.f32.gmra.mrb[0].mxu0 %v1879
        %v1881 = vpop.f32.mrb[0].mxu0
        %v1882 = vpop.f32.mrb[0].mxu0
        %1883 = vmatprep.mubr.f32.mxu0 0.0
        %v1884 = vand.u32 %v1122, 4294901760
        %v1885 = vsub.f32 %v1122, %v1884
        %v1886 = vand.u32 %v1885, 4294901760
        %1887 = vmatmul.mubr.f32.gmra.mrb[0].mxu0 %v1886
        %v1888 = vpop.f32.mrb[0].mxu0
        %v1889 = vpop.f32.mrb[0].mxu0
        %1890 = vmatprep.mubr.f32.mxu0 0.0
        %v1891 = vand.u32 %v1123, 4294901760
        %v1892 = vsub.f32 %v1123, %v1891
        %v1893 = vand.u32 %v1892, 4294901760
        %1894 = vmatmul.mubr.f32.gmra.mrb[0].mxu0 %v1893
        %v1895 = vpop.f32.mrb[0].mxu0
        %v1896 = vpop.f32.mrb[0].mxu0
        %1897 = vmatprep.mubr.f32.mxu0 0.0
        %v1898 = vand.u32 %v1124, 4294901760
        %v1899 = vsub.f32 %v1124, %v1898
        %v1900 = vand.u32 %v1899, 4294901760
        %1901 = vmatmul.mubr.f32.gmra.mrb[0].mxu0 %v1900
        %v1902 = vpop.f32.mrb[0].mxu0
        %v1903 = vpop.f32.mrb[0].mxu0
        %1904 = vmatprep.mubr.f32.mxu0 0.0
        %v1905 = vand.u32 %v1125, 4294901760
        %v1906 = vsub.f32 %v1125, %v1905
        %v1907 = vand.u32 %v1906, 4294901760
        %1908 = vmatmul.mubr.f32.gmra.mrb[0].mxu0 %v1907
        %v1909 = vpop.f32.mrb[0].mxu0
        %v1910 = vpop.f32.mrb[0].mxu0
        %1911 = vmatprep.mubr.f32.mxu0 0.0
        %v1912 = vand.u32 %v1126, 4294901760
        %v1913 = vsub.f32 %v1126, %v1912
        %v1914 = vand.u32 %v1913, 4294901760
        %1915 = vmatmul.mubr.f32.gmra.mrb[0].mxu0 %v1914
        %v1916 = vpop.f32.mrb[0].mxu0
        %v1917 = vpop.f32.mrb[0].mxu0
        %1918 = vmatprep.mubr.f32.mxu0 0.0
        %v1919 = vand.u32 %v1127, 4294901760
        %v1920 = vsub.f32 %v1127, %v1919
        %v1921 = vand.u32 %v1920, 4294901760
        %1922 = vmatmul.mubr.f32.gmra.mrb[0].mxu0 %v1921
        %v1923 = vpop.f32.mrb[0].mxu0
        %v1924 = vpop.f32.mrb[0].mxu0
        %1925 = vmatprep.mubr.f32.mxu0 0.0
        %v1926 = vand.u32 %v1128, 4294901760
        %v1927 = vsub.f32 %v1128, %v1926
        %v1928 = vand.u32 %v1927, 4294901760
        %1929 = vmatmul.mubr.f32.gmra.mrb[0].mxu0 %v1928
        %v1930 = vpop.f32.mrb[0].mxu0
        %v1931 = vpop.f32.mrb[0].mxu0
        %1932 = vmatprep.mubr.f32.mxu0 0.0
        %v1933 = vand.u32 %v1129, 4294901760
        %v1934 = vsub.f32 %v1129, %v1933
        %v1935 = vand.u32 %v1934, 4294901760
        %1936 = vmatmul.mubr.f32.gmra.mrb[0].mxu0 %v1935
        %v1937 = vpop.f32.mrb[0].mxu0
        %v1938 = vpop.f32.mrb[0].mxu0
        %1939 = vmatprep.mubr.f32.mxu0 0.0
        %v1940 = vand.u32 %v1130, 4294901760
        %v1941 = vsub.f32 %v1130, %v1940
        %v1942 = vand.u32 %v1941, 4294901760
        %1943 = vmatmul.mubr.f32.gmra.mrb[0].mxu0 %v1942
        %v1944 = vpop.f32.mrb[0].mxu0
        %v1945 = vpop.f32.mrb[0].mxu0
        %1946 = vmatprep.mubr.f32.mxu0 0.0
        %v1947 = vand.u32 %v1131, 4294901760
        %v1948 = vsub.f32 %v1131, %v1947
        %v1949 = vand.u32 %v1948, 4294901760
        %1950 = vmatmul.mubr.f32.gmra.mrb[0].mxu0 %v1949
        %v1951 = vpop.f32.mrb[0].mxu0
        %v1952 = vpop.f32.mrb[0].mxu0
        %1953 = vmatprep.mubr.f32.mxu0 0.0
        %v1954 = vand.u32 %v1132, 4294901760
        %v1955 = vsub.f32 %v1132, %v1954
        %v1956 = vand.u32 %v1955, 4294901760
        %1957 = vmatmul.mubr.f32.gmra.mrb[0].mxu0 %v1956
        %v1958 = vpop.f32.mrb[0].mxu0
        %v1959 = vpop.f32.mrb[0].mxu0
        %1960 = vmatprep.mubr.f32.mxu0 0.0
        %v1961 = vand.u32 %v1133, 4294901760
        %v1962 = vsub.f32 %v1133, %v1961
        %v1963 = vand.u32 %v1962, 4294901760
        %1964 = vmatmul.mubr.f32.gmra.mrb[0].mxu0 %v1963
        %v1965 = vpop.f32.mrb[0].mxu0
        %v1966 = vpop.f32.mrb[0].mxu0
        %1967 = vmatprep.mubr.f32.mxu0 0.0
        %v1968 = vand.u32 %v1134, 4294901760
        %v1969 = vsub.f32 %v1134, %v1968
        %v1970 = vand.u32 %v1969, 4294901760
        %1971 = vmatmul.mubr.f32.gmra.mrb[0].mxu0 %v1970
        %v1972 = vpop.f32.mrb[0].mxu0
        %v1973 = vpop.f32.mrb[0].mxu0
        %1974 = vdwg.mxu0
        %1975 = vmatprep.subr.mxu0 0.0
        %v1976 = vand.u32 %v956, 4294901760
        %v1977 = vsub.f32 %v956, %v1976
        %v1978 = vand.u32 %v1977, 4294901760
        %1979 = vmatpush1.msra.mxu0 %v1978
        %1980 = vmatprep.subr.mxu0 0.0
        %v1981 = vand.u32 %v957, 4294901760
        %v1982 = vsub.f32 %v957, %v1981
        %v1983 = vand.u32 %v1982, 4294901760
        %1984 = vmatpush1.msra.mxu0 %v1983
        %1985 = vmatprep.subr.mxu0 0.0
        %v1986 = vand.u32 %v958, 4294901760
        %v1987 = vsub.f32 %v958, %v1986
        %v1988 = vand.u32 %v1987, 4294901760
        %1989 = vmatpush1.msra.mxu0 %v1988
        %1990 = vmatprep.subr.mxu0 0.0
        %v1991 = vand.u32 %v959, 4294901760
        %v1992 = vsub.f32 %v959, %v1991
        %v1993 = vand.u32 %v1992, 4294901760
        %1994 = vmatpush1.msra.mxu0 %v1993
        %1995 = vmatprep.subr.mxu0 0.0
        %v1996 = vand.u32 %v960, 4294901760
        %v1997 = vsub.f32 %v960, %v1996
        %v1998 = vand.u32 %v1997, 4294901760
        %1999 = vmatpush1.msra.mxu0 %v1998
        %2000 = vmatprep.subr.mxu0 0.0
        %v2001 = vand.u32 %v961, 4294901760
        %v2002 = vsub.f32 %v961, %v2001
        %v2003 = vand.u32 %v2002, 4294901760
        %2004 = vmatpush1.msra.mxu0 %v2003
        %2005 = vmatprep.subr.mxu0 0.0
        %v2006 = vand.u32 %v962, 4294901760
        %v2007 = vsub.f32 %v962, %v2006
        %v2008 = vand.u32 %v2007, 4294901760
        %2009 = vmatpush1.msra.mxu0 %v2008
        %2010 = vmatprep.subr.mxu0 0.0
        %v2011 = vand.u32 %v963, 4294901760
        %v2012 = vsub.f32 %v963, %v2011
        %v2013 = vand.u32 %v2012, 4294901760
        %2014 = vmatpush1.msra.mxu0 %v2013
        %2015 = vmatprep.subr.mxu0 0.0
        %v2016 = vand.u32 %v964, 4294901760
        %v2017 = vsub.f32 %v964, %v2016
        %v2018 = vand.u32 %v2017, 4294901760
        %2019 = vmatpush1.msra.mxu0 %v2018
        %2020 = vmatprep.subr.mxu0 0.0
        %v2021 = vand.u32 %v965, 4294901760
        %v2022 = vsub.f32 %v965, %v2021
        %v2023 = vand.u32 %v2022, 4294901760
        %2024 = vmatpush1.msra.mxu0 %v2023
        %2025 = vmatprep.subr.mxu0 0.0
        %v2026 = vand.u32 %v966, 4294901760
        %v2027 = vsub.f32 %v966, %v2026
        %v2028 = vand.u32 %v2027, 4294901760
        %2029 = vmatpush1.msra.mxu0 %v2028
        %2030 = vmatprep.subr.mxu0 0.0
        %v2031 = vand.u32 %v967, 4294901760
        %v2032 = vsub.f32 %v967, %v2031
        %v2033 = vand.u32 %v2032, 4294901760
        %2034 = vmatpush1.msra.mxu0 %v2033
        %2035 = vmatprep.subr.mxu0 0.0
        %v2036 = vand.u32 %v968, 4294901760
        %v2037 = vsub.f32 %v968, %v2036
        %v2038 = vand.u32 %v2037, 4294901760
        %2039 = vmatpush1.msra.mxu0 %v2038
        %2040 = vmatprep.subr.mxu0 0.0
        %v2041 = vand.u32 %v969, 4294901760
        %v2042 = vsub.f32 %v969, %v2041
        %v2043 = vand.u32 %v2042, 4294901760
        %2044 = vmatpush1.msra.mxu0 %v2043
        %2045 = vmatprep.subr.mxu0 0.0
        %v2046 = vand.u32 %v970, 4294901760
        %v2047 = vsub.f32 %v970, %v2046
        %v2048 = vand.u32 %v2047, 4294901760
        %2049 = vmatpush1.msra.mxu0 %v2048
        %2050 = vmatprep.subr.mxu0 0.0
        %v2051 = vand.u32 %v971, 4294901760
        %v2052 = vsub.f32 %v971, %v2051
        %v2053 = vand.u32 %v2052, 4294901760
        %2054 = vmatpush1.msra.mxu0 %v2053
        %2055 = vmatprep.subr.mxu0 0.0
        %2056 = vmatpush1.msra.mxu0 0.0
        %2057 = vmatprep.subr.mxu0 0.0
        %2058 = vmatpush1.msra.mxu0 0.0
        %2059 = vmatprep.subr.mxu0 0.0
        %2060 = vmatpush1.msra.mxu0 0.0
        %2061 = vmatprep.subr.mxu0 0.0
        %2062 = vmatpush1.msra.mxu0 0.0
        %2063 = vmatprep.subr.mxu0 0.0
        %2064 = vmatpush1.msra.mxu0 0.0
        %2065 = vmatprep.subr.mxu0 0.0
        %2066 = vmatpush1.msra.mxu0 0.0
        %2067 = vmatprep.subr.mxu0 0.0
        %2068 = vmatpush1.msra.mxu0 0.0
        %2069 = vmatprep.subr.mxu0 0.0
        %2070 = vmatpush1.msra.mxu0 0.0
        %2071 = vmatprep.subr.mxu0 0.0
        %2072 = vmatpush1.msra.mxu0 0.0
        %2073 = vmatprep.subr.mxu0 0.0
        %2074 = vmatpush1.msra.mxu0 0.0
        %2075 = vmatprep.subr.mxu0 0.0
        %2076 = vmatpush1.msra.mxu0 0.0
        %2077 = vmatprep.subr.mxu0 0.0
        %2078 = vmatpush1.msra.mxu0 0.0
        %2079 = vmatprep.subr.mxu0 0.0
        %2080 = vmatpush1.msra.mxu0 0.0
        %2081 = vmatprep.subr.mxu0 0.0
        %2082 = vmatpush1.msra.mxu0 0.0
        %2083 = vmatprep.subr.mxu0 0.0
        %2084 = vmatpush1.msra.mxu0 0.0
        %2085 = vmatprep.subr.mxu0 0.0
        %2086 = vmatpush1.msra.mxu0 0.0
        %2087 = vmatprep.mubr.f32.mxu0 0.0
        %v2088 = vand.u32 %v1119, 4294901760
        %2089 = vmatmul.mubr.f32.gmra.mrb[0].mxu0 %v2088
        %v2090 = vpop.f32.mrb[0].mxu0
        %v2091 = vadd.f32 %v1867, %v2090
        %v2092 = vpop.f32.mrb[0].mxu0
        %2093 = vmatprep.mubr.f32.mxu0 0.0
        %v2094 = vand.u32 %v1120, 4294901760
        %2095 = vmatmul.mubr.f32.gmra.mrb[0].mxu0 %v2094
        %v2096 = vpop.f32.mrb[0].mxu0
        %v2097 = vpop.f32.mrb[0].mxu0
        %2098 = vmatprep.mubr.f32.mxu0 0.0
        %v2099 = vand.u32 %v1121, 4294901760
        %2100 = vmatmul.mubr.f32.gmra.mrb[0].mxu0 %v2099
        %v2101 = vpop.f32.mrb[0].mxu0
        %v2102 = vpop.f32.mrb[0].mxu0
        %2103 = vmatprep.mubr.f32.mxu0 0.0
        %v2104 = vand.u32 %v1122, 4294901760
        %2105 = vmatmul.mubr.f32.gmra.mrb[0].mxu0 %v2104
        %v2106 = vpop.f32.mrb[0].mxu0
        %v2107 = vpop.f32.mrb[0].mxu0
        %2108 = vmatprep.mubr.f32.mxu0 0.0
        %v2109 = vand.u32 %v1123, 4294901760
        %2110 = vmatmul.mubr.f32.gmra.mrb[0].mxu0 %v2109
        %v2111 = vpop.f32.mrb[0].mxu0
        %v2112 = vpop.f32.mrb[0].mxu0
        %2113 = vmatprep.mubr.f32.mxu0 0.0
        %v2114 = vand.u32 %v1124, 4294901760
        %2115 = vmatmul.mubr.f32.gmra.mrb[0].mxu0 %v2114
        %v2116 = vpop.f32.mrb[0].mxu0
        %v2117 = vpop.f32.mrb[0].mxu0
        %2118 = vmatprep.mubr.f32.mxu0 0.0
        %v2119 = vand.u32 %v1125, 4294901760
        %2120 = vmatmul.mubr.f32.gmra.mrb[0].mxu0 %v2119
        %v2121 = vpop.f32.mrb[0].mxu0
        %v2122 = vpop.f32.mrb[0].mxu0
        %2123 = vmatprep.mubr.f32.mxu0 0.0
        %v2124 = vand.u32 %v1126, 4294901760
        %2125 = vmatmul.mubr.f32.gmra.mrb[0].mxu0 %v2124
        %v2126 = vpop.f32.mrb[0].mxu0
        %v2127 = vpop.f32.mrb[0].mxu0
        %2128 = vmatprep.mubr.f32.mxu0 0.0
        %v2129 = vand.u32 %v1127, 4294901760
        %2130 = vmatmul.mubr.f32.gmra.mrb[0].mxu0 %v2129
        %v2131 = vpop.f32.mrb[0].mxu0
        %v2132 = vpop.f32.mrb[0].mxu0
        %2133 = vmatprep.mubr.f32.mxu0 0.0
        %v2134 = vand.u32 %v1128, 4294901760
        %2135 = vmatmul.mubr.f32.gmra.mrb[0].mxu0 %v2134
        %v2136 = vpop.f32.mrb[0].mxu0
        %v2137 = vpop.f32.mrb[0].mxu0
        %2138 = vmatprep.mubr.f32.mxu0 0.0
        %v2139 = vand.u32 %v1129, 4294901760
        %2140 = vmatmul.mubr.f32.gmra.mrb[0].mxu0 %v2139
        %v2141 = vpop.f32.mrb[0].mxu0
        %v2142 = vpop.f32.mrb[0].mxu0
        %2143 = vmatprep.mubr.f32.mxu0 0.0
        %v2144 = vand.u32 %v1130, 4294901760
        %2145 = vmatmul.mubr.f32.gmra.mrb[0].mxu0 %v2144
        %v2146 = vpop.f32.mrb[0].mxu0
        %v2147 = vpop.f32.mrb[0].mxu0
        %2148 = vmatprep.mubr.f32.mxu0 0.0
        %v2149 = vand.u32 %v1131, 4294901760
        %2150 = vmatmul.mubr.f32.gmra.mrb[0].mxu0 %v2149
        %v2151 = vpop.f32.mrb[0].mxu0
        %v2152 = vpop.f32.mrb[0].mxu0
        %2153 = vmatprep.mubr.f32.mxu0 0.0
        %v2154 = vand.u32 %v1132, 4294901760
        %2155 = vmatmul.mubr.f32.gmra.mrb[0].mxu0 %v2154
        %v2156 = vpop.f32.mrb[0].mxu0
        %v2157 = vpop.f32.mrb[0].mxu0
        %2158 = vmatprep.mubr.f32.mxu0 0.0
        %v2159 = vand.u32 %v1133, 4294901760
        %2160 = vmatmul.mubr.f32.gmra.mrb[0].mxu0 %v2159
        %v2161 = vpop.f32.mrb[0].mxu0
        %v2162 = vpop.f32.mrb[0].mxu0
        %2163 = vmatprep.mubr.f32.mxu0 0.0
        %v2164 = vand.u32 %v1134, 4294901760
        %2165 = vmatmul.mubr.f32.gmra.mrb[0].mxu0 %v2164
        %v2166 = vpop.f32.mrb[0].mxu0
        %v2167 = vpop.f32.mrb[0].mxu0
        %2168 = vdwg.mxu0
        %2169 = vmatprep.subr.mxu0 0.0
        %v2170 = vand.u32 %v956, 4294901760
        %2171 = vmatpush1.msra.mxu0 %v2170
        %2172 = vmatprep.subr.mxu0 0.0
        %v2173 = vand.u32 %v957, 4294901760
        %2174 = vmatpush1.msra.mxu0 %v2173
        %2175 = vmatprep.subr.mxu0 0.0
        %v2176 = vand.u32 %v958, 4294901760
        %2177 = vmatpush1.msra.mxu0 %v2176
        %2178 = vmatprep.subr.mxu0 0.0
        %v2179 = vand.u32 %v959, 4294901760
        %2180 = vmatpush1.msra.mxu0 %v2179
        %2181 = vmatprep.subr.mxu0 0.0
        %v2182 = vand.u32 %v960, 4294901760
        %2183 = vmatpush1.msra.mxu0 %v2182
        %2184 = vmatprep.subr.mxu0 0.0
        %v2185 = vand.u32 %v961, 4294901760
        %2186 = vmatpush1.msra.mxu0 %v2185
        %2187 = vmatprep.subr.mxu0 0.0
        %v2188 = vand.u32 %v962, 4294901760
        %2189 = vmatpush1.msra.mxu0 %v2188
        %2190 = vmatprep.subr.mxu0 0.0
        %v2191 = vand.u32 %v963, 4294901760
        %2192 = vmatpush1.msra.mxu0 %v2191
        %2193 = vmatprep.subr.mxu0 0.0
        %v2194 = vand.u32 %v964, 4294901760
        %2195 = vmatpush1.msra.mxu0 %v2194
        %2196 = vmatprep.subr.mxu0 0.0
        %v2197 = vand.u32 %v965, 4294901760
        %2198 = vmatpush1.msra.mxu0 %v2197
        %2199 = vmatprep.subr.mxu0 0.0
        %v2200 = vand.u32 %v966, 4294901760
        %2201 = vmatpush1.msra.mxu0 %v2200
        %2202 = vmatprep.subr.mxu0 0.0
        %v2203 = vand.u32 %v967, 4294901760
        %2204 = vmatpush1.msra.mxu0 %v2203
        %2205 = vmatprep.subr.mxu0 0.0
        %v2206 = vand.u32 %v968, 4294901760
        %2207 = vmatpush1.msra.mxu0 %v2206
        %2208 = vmatprep.subr.mxu0 0.0
        %v2209 = vand.u32 %v969, 4294901760
        %2210 = vmatpush1.msra.mxu0 %v2209
        %2211 = vmatprep.subr.mxu0 0.0
        %v2212 = vand.u32 %v970, 4294901760
        %2213 = vmatpush1.msra.mxu0 %v2212
        %2214 = vmatprep.subr.mxu0 0.0
        %v2215 = vand.u32 %v971, 4294901760
        %2216 = vmatpush1.msra.mxu0 %v2215
        %2217 = vmatprep.subr.mxu0 0.0
        %2218 = vmatpush1.msra.mxu0 0.0
        %2219 = vmatprep.subr.mxu0 0.0
        %2220 = vmatpush1.msra.mxu0 0.0
        %2221 = vmatprep.subr.mxu0 0.0
        %2222 = vmatpush1.msra.mxu0 0.0
        %2223 = vmatprep.subr.mxu0 0.0
        %2224 = vmatpush1.msra.mxu0 0.0
        %2225 = vmatprep.subr.mxu0 0.0
        %2226 = vmatpush1.msra.mxu0 0.0
        %2227 = vmatprep.subr.mxu0 0.0
        %2228 = vmatpush1.msra.mxu0 0.0
        %2229 = vmatprep.subr.mxu0 0.0
        %2230 = vmatpush1.msra.mxu0 0.0
        %2231 = vmatprep.subr.mxu0 0.0
        %2232 = vmatpush1.msra.mxu0 0.0
        %2233 = vmatprep.subr.mxu0 0.0
        %2234 = vmatpush1.msra.mxu0 0.0
        %2235 = vmatprep.subr.mxu0 0.0
        %2236 = vmatpush1.msra.mxu0 0.0
        %2237 = vmatprep.subr.mxu0 0.0
        %2238 = vmatpush1.msra.mxu0 0.0
        %2239 = vmatprep.subr.mxu0 0.0
        %2240 = vmatpush1.msra.mxu0 0.0
        %2241 = vmatprep.subr.mxu0 0.0
        %2242 = vmatpush1.msra.mxu0 0.0
        %2243 = vmatprep.subr.mxu0 0.0
        %2244 = vmatpush1.msra.mxu0 0.0
        %2245 = vmatprep.subr.mxu0 0.0
        %2246 = vmatpush1.msra.mxu0 0.0
        %2247 = vmatprep.subr.mxu0 0.0
        %2248 = vmatpush1.msra.mxu0 0.0
        %2249 = vmatprep.mubr.f32.mxu0 0.0
        %v2250 = vand.u32 %v1119, 4294901760
        %2251 = vmatmul.mubr.f32.gmra.mrb[0].mxu0 %v2250
        %v2252 = vpop.f32.mrb[0].mxu0
        %v2253 = vadd.f32 %v2091, %v2252
        %v2254 = vpop.f32.mrb[0].mxu0
        %2255 = vmatprep.mubr.f32.mxu0 0.0
        %v2256 = vand.u32 %v1120, 4294901760
        %2257 = vmatmul.mubr.f32.gmra.mrb[0].mxu0 %v2256
        %v2258 = vpop.f32.mrb[0].mxu0
        %v2259 = vpop.f32.mrb[0].mxu0
        %2260 = vmatprep.mubr.f32.mxu0 0.0
        %v2261 = vand.u32 %v1121, 4294901760
        %2262 = vmatmul.mubr.f32.gmra.mrb[0].mxu0 %v2261
        %v2263 = vpop.f32.mrb[0].mxu0
        %v2264 = vpop.f32.mrb[0].mxu0
        %2265 = vmatprep.mubr.f32.mxu0 0.0
        %v2266 = vand.u32 %v1122, 4294901760
        %2267 = vmatmul.mubr.f32.gmra.mrb[0].mxu0 %v2266
        %v2268 = vpop.f32.mrb[0].mxu0
        %v2269 = vpop.f32.mrb[0].mxu0
        %2270 = vmatprep.mubr.f32.mxu0 0.0
        %v2271 = vand.u32 %v1123, 4294901760
        %2272 = vmatmul.mubr.f32.gmra.mrb[0].mxu0 %v2271
        %v2273 = vpop.f32.mrb[0].mxu0
        %v2274 = vpop.f32.mrb[0].mxu0
        %2275 = vmatprep.mubr.f32.mxu0 0.0
        %v2276 = vand.u32 %v1124, 4294901760
        %2277 = vmatmul.mubr.f32.gmra.mrb[0].mxu0 %v2276
        %v2278 = vpop.f32.mrb[0].mxu0
        %v2279 = vpop.f32.mrb[0].mxu0
        %2280 = vmatprep.mubr.f32.mxu0 0.0
        %v2281 = vand.u32 %v1125, 4294901760
        %2282 = vmatmul.mubr.f32.gmra.mrb[0].mxu0 %v2281
        %v2283 = vpop.f32.mrb[0].mxu0
        %v2284 = vpop.f32.mrb[0].mxu0
        %2285 = vmatprep.mubr.f32.mxu0 0.0
        %v2286 = vand.u32 %v1126, 4294901760
        %2287 = vmatmul.mubr.f32.gmra.mrb[0].mxu0 %v2286
        %v2288 = vpop.f32.mrb[0].mxu0
        %v2289 = vpop.f32.mrb[0].mxu0
        %2290 = vmatprep.mubr.f32.mxu0 0.0
        %v2291 = vand.u32 %v1127, 4294901760
        %2292 = vmatmul.mubr.f32.gmra.mrb[0].mxu0 %v2291
        %v2293 = vpop.f32.mrb[0].mxu0
        %v2294 = vpop.f32.mrb[0].mxu0
        %2295 = vmatprep.mubr.f32.mxu0 0.0
        %v2296 = vand.u32 %v1128, 4294901760
        %2297 = vmatmul.mubr.f32.gmra.mrb[0].mxu0 %v2296
        %v2298 = vpop.f32.mrb[0].mxu0
        %v2299 = vpop.f32.mrb[0].mxu0
        %2300 = vmatprep.mubr.f32.mxu0 0.0
        %v2301 = vand.u32 %v1129, 4294901760
        %2302 = vmatmul.mubr.f32.gmra.mrb[0].mxu0 %v2301
        %v2303 = vpop.f32.mrb[0].mxu0
        %v2304 = vpop.f32.mrb[0].mxu0
        %2305 = vmatprep.mubr.f32.mxu0 0.0
        %v2306 = vand.u32 %v1130, 4294901760
        %2307 = vmatmul.mubr.f32.gmra.mrb[0].mxu0 %v2306
        %v2308 = vpop.f32.mrb[0].mxu0
        %v2309 = vpop.f32.mrb[0].mxu0
        %2310 = vmatprep.mubr.f32.mxu0 0.0
        %v2311 = vand.u32 %v1131, 4294901760
        %2312 = vmatmul.mubr.f32.gmra.mrb[0].mxu0 %v2311
        %v2313 = vpop.f32.mrb[0].mxu0
        %v2314 = vpop.f32.mrb[0].mxu0
        %2315 = vmatprep.mubr.f32.mxu0 0.0
        %v2316 = vand.u32 %v1132, 4294901760
        %2317 = vmatmul.mubr.f32.gmra.mrb[0].mxu0 %v2316
        %v2318 = vpop.f32.mrb[0].mxu0
        %v2319 = vpop.f32.mrb[0].mxu0
        %2320 = vmatprep.mubr.f32.mxu0 0.0
        %v2321 = vand.u32 %v1133, 4294901760
        %2322 = vmatmul.mubr.f32.gmra.mrb[0].mxu0 %v2321
        %v2323 = vpop.f32.mrb[0].mxu0
        %v2324 = vpop.f32.mrb[0].mxu0
        %2325 = vmatprep.mubr.f32.mxu0 0.0
        %v2326 = vand.u32 %v1134, 4294901760
        %2327 = vmatmul.mubr.f32.gmra.mrb[0].mxu0 %v2326
        %v2328 = vpop.f32.mrb[0].mxu0
        %v2329 = vpop.f32.mrb[0].mxu0
        %2330 = vdwg.mxu0
        %v2331 = vld [vmem:[%s175] sm:$0xff]
        %v2332 = vadd.f32 %v2331, %v2253
        %2333 = vst [vmem:[%s175] sm:$0xff] %v2332
        %s2334 = sand.u32 %s92, 1
        %s2335 = scalar_lea.sflag [#allocation3], %s2334
        %s2336 = sand.u32 %s92, 1
        %s2337 = smul.addr %s2336, 8
        %s2338 = scalar_lea.vmem [#allocation2], %s2337
        // Predicated region
        $region33: #{tpu_custom_call.1} parent=27 // pred_check
          %p2339 = pneg %p102
        $region34: #{tpu_custom_call.1} parent=27 // pred_check_branch
          %2341 = sbr.rel (%p2339) target = $region36
        $region35: #{tpu_custom_call.1} parent=27 // pred_region
          %s2343 = ssub.s32 128, 128
          %2344 = vsyncadd %s2335, %s2343
          %s2345 = smul.addr %s20, 128
          %s2346 = scalar_lea.hbm %s2, %s2345
          %s2348 = sshll.u32 %s2338, 4
          %s2349 = int_to_ptr.vmem [resolvable:$true] %s2348
          %2351 = dma.vmem_to_hbm [thread:$0]  %s2349, 128, %s2346, %s2335
        $region36: #{tpu_custom_call.1} parent=27 // pred_fallthru
          _
      $region28: #{tpu_custom_call.1} parent=5 // pred_fallthru
        _
      %p2352 = scmp.le.s32.totalorder 2, %s11
      // Predicated region
      $region37: #{tpu_custom_call.1} parent=5 // pred_check
        %p2353 = pneg %p2352
      $region38: #{tpu_custom_call.1} parent=5 // pred_check_branch
        %2355 = sbr.rel (%p2353) target = $region40
      $region39: #{tpu_custom_call.1} parent=5 // pred_region
        %s2356 = ssub.s32 %s11, 2
        // Predicated region
        $region41: #{tpu_custom_call.1} parent=39 // pred_check
          %p2357 = pneg %p108
        $region42: #{tpu_custom_call.1} parent=39 // pred_check_branch
          %2359 = sbr.rel (%p2357) target = $region44
        $region43: #{tpu_custom_call.1} parent=39 // pred_region
          %s2360 = sand.u32 %s93, 1
          %s2361 = scalar_lea.sflag [#allocation3], %s2360
          %s2362 = sand.u32 %s93, 1
          %s2363 = smul.addr %s2362, 8
          %s2364 = scalar_lea.vmem [#allocation2], %s2363
          %2365 = dma.done %s2361, 128
        $region44: #{tpu_custom_call.1} parent=39 // pred_fallthru
          _
      $region40: #{tpu_custom_call.1} parent=5 // pred_fallthru
        _
    $region6: #{tpu_custom_call.1} parent=1 // loop_footer
      %s15 = sadd.s32 1, %s11
    $region7: #{tpu_custom_call.1} parent=1 // loop_footer_branch
      %10 = sbr.rel target = $region3
    $region8: #{tpu_custom_call.1} parent=1 // loop_exit
      _
    %2366 = vsyncpa [#allocation3], 1
    %s2367 = scalar_lea.sflag [#allocation3], 1
    %2368 = vsyncpa %s2367, 1

</llo_original>
